<compile_context>
chip_gen: v7x
topology: tpu7x:2x2x1
jax: 0.10.0
libtpu: 0.0.40
codegen_flags: <defaults>
</compile_context>

<pallas_src>
import numpy as np
import jax
import jax.numpy as jnp
from jax.experimental import pallas as pl
from jax.experimental.pallas import tpu as pltpu


# --------------------------------------------------------------------------
# Fused Pallas kernel: ProjectionHead(image) + ProjectionHead(class) + CCIP loss
# --------------------------------------------------------------------------

def _gelu(x):
    # TODO(synk): PyTorch nn.GELU() default is erf-based; tanh approximation is used
    # here (maps onto the TPU EUP). Per-element difference < 1e-3.
    return jax.nn.gelu(x, approximate=True)


def _projection_tile(x_ref, w1_ref, w2_ref, vec_ref):
    """ProjectionHead on one row-tile: LayerNorm(fc(gelu(proj(x))) + proj(x)).

    vec_ref rows: 0=b1, 1=b2, 2=gamma, 3=beta (rows 4..7 padding).
    Dropout = identity (eval). Weights bf16 (MXU), accumulation in f32.
    Returns f32 [tm, P].
    """
    vec = vec_ref[...]                               # (8, P) f32
    b1 = vec[0:1, :]
    b2 = vec[1:2, :]
    gamma = vec[2:3, :]
    beta = vec[3:4, :]

    x = x_ref[...]                                   # bf16 (cast in wrapper)
    projected = jnp.dot(x, w1_ref[...], preferred_element_type=jnp.float32) + b1
    h = _gelu(projected).astype(jnp.bfloat16)
    h = jnp.dot(h, w2_ref[...], preferred_element_type=jnp.float32) + b2
    h = h + projected
    # Two-pass LayerNorm statistics (safer than E[x^2] - E[x]^2).
    mean = jnp.mean(h, axis=-1, keepdims=True)
    c = h - mean
    var = jnp.mean(c * c, axis=-1, keepdims=True)
    return (c * jax.lax.rsqrt(var + 1e-5)) * gamma + beta


def _sim(a, b):
    """a @ b.T with f32 accumulation, no explicit transpose materialization."""
    return jax.lax.dot_general(a, b, (((1,), (1,)), ((), ())),
                               preferred_element_type=jnp.float32)


def fused_ccip_kernel(
    img_x_ref, cls_x_ref,
    iw1_ref, iw2_ref, ivec_ref,
    cw1_ref, cw2_ref, cvec_ref,
    scale_ref,                       # SMEM (1, 1) logit scale (pre-exp)
    loss_ref,                        # SMEM (1, 1) output
    emb_ref,                         # VMEM scratch (B, 2P) bf16: [:, :P]=image, [:, P:]=class
):
    i = pl.program_id(0)
    tm = img_x_ref.shape[0]
    B = emb_ref.shape[0]
    P = iw1_ref.shape[1]

    # ---- projection heads for this batch-row tile ----
    img_emb = _projection_tile(img_x_ref, iw1_ref, iw2_ref, ivec_ref)
    cls_emb = _projection_tile(cls_x_ref, cw1_ref, cw2_ref, cvec_ref)

    r0 = pl.multiple_of(i * tm, tm)
    emb_ref[pl.ds(r0, tm), 0:P] = img_emb.astype(jnp.bfloat16)
    emb_ref[pl.ds(r0, tm), P:2 * P] = cls_emb.astype(jnp.bfloat16)

    # ---- CCIP contrastive loss, on the last grid step only ----
    # NOTE: untiled BxB phase (~4 live BxB f32 temporaries); flash-style tile it
    # over the column axis before running B >= ~1K on v7x.
    @pl.when(i == pl.num_programs(0) - 1)
    def _():
        E = emb_ref[...]                       # (B, 2P) bf16
        img = E[:, 0:P]                        # static, tile-aligned lane slices
        cls = E[:, P:2 * P]
        s = jnp.exp(scale_ref[0, 0])

        # I@I.T + C@C.T in one K=2P matmul (block structure of E @ E.T).
        sim_sum = _sim(E, E)                   # [B, B] f32
        logits = s * _sim(cls, img)            # logits_per_class; logits_per_image == logits.T

        # Soft targets: row-softmax of s*(II+CC)/2, kept unnormalized (t_exp) and
        # folded algebraically into the loss (rows of T sum to 1).
        t_logits = (0.5 * s) * sim_sum
        t_exp = jnp.exp(t_logits - jnp.max(t_logits, axis=-1, keepdims=True))
        t_rinv = pl.reciprocal(jnp.sum(t_exp, axis=-1, keepdims=True), approx=True)  # (B,1)

        # Shared cross term  sum_ij T[i,j] * logits[i,j].
        tl = jnp.sum(jnp.sum(t_exp * logits, axis=-1, keepdims=True) * t_rinv)
        # Column sums of the targets matrix.
        col_t = jnp.sum(t_exp * t_rinv, axis=0, keepdims=True)                       # (1,B)

        # Row / column log-sum-exp of logits, each with its own max shift (sharing
        # one exp pass via exp(rowmax-colmax) over/underflows at these logit scales).
        rmax = jnp.max(logits, axis=-1, keepdims=True)                               # (B,1)
        lse_row = rmax + jnp.log(jnp.sum(jnp.exp(logits - rmax), axis=-1, keepdims=True))
        cmax = jnp.max(logits, axis=0, keepdims=True)                                # (1,B)
        lse_col = cmax + jnp.log(jnp.sum(jnp.exp(logits - cmax), axis=0, keepdims=True))

        # texts_loss_i  = -sum_j T[i,j] logits[i,j] + lse_row[i]
        # images_loss_i = -sum_j T[j,i] logits[j,i] + lse_col[i] * colsum(T)[i]
        texts_term = jnp.sum(lse_row) - tl
        images_term = jnp.sum(lse_col * col_t) - tl
        loss_ref[0, 0] = (texts_term + images_term) * (1.0 / (2.0 * B))


# --------------------------------------------------------------------------
# pallas_call wrapper
# --------------------------------------------------------------------------

def _resident(shape):
    """Resident weight spec: constant block index across the grid, single-buffered."""
    nd = len(shape)
    return pl.BlockSpec(shape, lambda i, _nd=nd: (0,) * _nd,
                        pipeline_mode=pl.Buffered(buffer_count=1))


def _estimate_vmem_bytes(B, Dimg, Dcls, P, tm):
    bf16, f32 = 2, 4
    weights = ((Dimg + P) * P + (Dcls + P) * P) * bf16 + 2 * 8 * P * f32   # single-buffered
    pipelined_io = 2 * tm * (Dimg + Dcls) * bf16                           # double-buffered inputs
    emb_scratch = B * 2 * P * bf16
    proj_tmp = 8 * tm * P * f32
    loss_tmp = 6 * B * B * f32
    est = int(1.5 * (weights + pipelined_io + emb_scratch + proj_tmp + loss_tmp))
    return max(min(est, 128 << 20), 32 << 20)


def ccip_fused_loss(image_features, class_features, params, *, tm=None):
    """Fused ProjectionHead x2 + CCIP loss. Returns scalar f32 loss."""
    B, Dimg = image_features.shape
    B2, Dcls = class_features.shape
    assert B == B2
    P = params["img_w1"].shape[1]

    if tm is None:
        tm = min(B, 1024)       # few fat steps; the grid axis is sequential anyway
    assert B % tm == 0, "batch must be divisible by the row tile"
    grid = (B // tm,)

    bf16 = jnp.bfloat16
    scale = jnp.reshape(params["logit_scale"].astype(jnp.float32), (1, 1))

    def pack_vec(b1, b2, g, bt):
        rows = [jnp.reshape(v.astype(jnp.float32), (1, P)) for v in (b1, b2, g, bt)]
        rows.append(jnp.zeros((4, P), jnp.float32))
        return jnp.concatenate(rows, axis=0)            # (8, P): b1, b2, gamma, beta, pad

    img_vec = pack_vec(params["img_b1"], params["img_b2"], params["img_g"], params["img_bt"])
    cls_vec = pack_vec(params["cls_b1"], params["cls_b2"], params["cls_g"], params["cls_bt"])

    out = pl.pallas_call(
        fused_ccip_kernel,
        grid=grid,
        in_specs=[
            pl.BlockSpec((tm, Dimg), lambda i: (i, 0)),   # image features (bf16, pipelined)
            pl.BlockSpec((tm, Dcls), lambda i: (i, 0)),   # class features (bf16, pipelined)
            _resident((Dimg, P)),                         # img w1 (bf16)
            _resident((P, P)),                            # img w2 (bf16)
            _resident((8, P)),                            # img b1/b2/gamma/beta (f32)
            _resident((Dcls, P)),                         # cls w1 (bf16)
            _resident((P, P)),                            # cls w2 (bf16)
            _resident((8, P)),                            # cls b1/b2/gamma/beta (f32)
            pl.BlockSpec(memory_space=pltpu.MemorySpace.SMEM),   # logit scale scalar
        ],
        out_specs=pl.BlockSpec(memory_space=pltpu.MemorySpace.SMEM),
        out_shape=jax.ShapeDtypeStruct((1, 1), jnp.float32),
        scratch_shapes=[
            pltpu.VMEM((B, 2 * P), jnp.bfloat16),         # [image | class] embeddings
        ],
        compiler_params=pltpu.CompilerParams(
            # Final step consumes the full VMEM-resident embeddings written by all
            # previous steps -> the grid axis is sequential ("arbitrary").
            dimension_semantics=("arbitrary",),
            vmem_limit_bytes=_estimate_vmem_bytes(B, Dimg, Dcls, P, tm),
        ),
    )(
        image_features.astype(bf16), class_features.astype(bf16),
        params["img_w1"].astype(bf16), params["img_w2"].astype(bf16), img_vec,
        params["cls_w1"].astype(bf16), params["cls_w2"].astype(bf16), cls_vec,
        scale,
    )
    return out[0, 0]


# --------------------------------------------------------------------------
# Model (parameter setup + glue in plain JAX, hot path in Pallas)
# --------------------------------------------------------------------------

def init_params(key, *, in_channels, num_atr, num_obj,
                image_embedding, class_embedding, projection_dim):
    ks = jax.random.split(key, 8)
    std = 0.02
    p = {}
    # ImageEncoder stand-in: GAP + Linear(in_channels -> image_embedding)
    p["enc_w"] = std * jax.random.normal(ks[0], (in_channels, image_embedding), jnp.float32)
    p["enc_b"] = jnp.zeros((1, image_embedding), jnp.float32)
    # ClassEncoder: two embedding tables of dim class_embedding
    p["atr_table"] = std * jax.random.normal(ks[1], (num_atr + 1, class_embedding), jnp.float32)
    p["obj_table"] = std * jax.random.normal(ks[2], (num_obj + 1, class_embedding), jnp.float32)
    # image ProjectionHead
    p["img_w1"] = std * jax.random.normal(ks[3], (image_embedding, projection_dim), jnp.float32)
    p["img_b1"] = jnp.zeros((1, projection_dim), jnp.float32)
    p["img_w2"] = std * jax.random.normal(ks[4], (projection_dim, projection_dim), jnp.float32)
    p["img_b2"] = jnp.zeros((1, projection_dim), jnp.float32)
    p["img_g"] = jnp.ones((1, projection_dim), jnp.float32)
    p["img_bt"] = jnp.zeros((1, projection_dim), jnp.float32)
    # class ProjectionHead (input dim = 2 * class_embedding)
    p["cls_w1"] = std * jax.random.normal(ks[5], (2 * class_embedding, projection_dim), jnp.float32)
    p["cls_b1"] = jnp.zeros((1, projection_dim), jnp.float32)
    p["cls_w2"] = std * jax.random.normal(ks[6], (projection_dim, projection_dim), jnp.float32)
    p["cls_b2"] = jnp.zeros((1, projection_dim), jnp.float32)
    p["cls_g"] = jnp.ones((1, projection_dim), jnp.float32)
    p["cls_bt"] = jnp.zeros((1, projection_dim), jnp.float32)
    # logit scale
    p["logit_scale"] = jnp.asarray(np.log(1.0 / 0.07), jnp.float32)
    return p


def ccip_forward(params, image, atr, obj):
    # ---- ImageEncoder stand-in (glue; XLA fuses the GAP + matmul) ----
    img_pooled = jnp.mean(image.astype(jnp.float32), axis=(2, 3))            # [B, C] from NCHW
    image_features = img_pooled @ params["enc_w"] + params["enc_b"]          # [B, image_embedding]

    # ---- ClassEncoder (glue: embedding gather + concat) ----
    atr_e = jnp.take(params["atr_table"], atr, axis=0)                       # [B, class_embedding]
    obj_e = jnp.take(params["obj_table"], obj, axis=0)                       # [B, class_embedding]
    class_features = jnp.concatenate([atr_e, obj_e], axis=-1)                # [B, 2*class_embedding]

    # ---- Fused projection heads + CCIP contrastive loss (single Pallas call) ----
    return ccip_fused_loss(image_features, class_features, params)


# --------------------------------------------------------------------------
# Demo
# --------------------------------------------------------------------------

if __name__ == "__main__":
    # Lane-dense, MXU-friendly small dims: image_embedding = 256,
    # 2*class_embedding = 256, projection_dim = 256, batch multiple of 8.
    B, C_in, H, W = 8, 4, 16, 16
    num_atr, num_obj = 5, 7
    image_embedding, class_embedding, projection_dim = 256, 128, 256

    key = jax.random.PRNGKey(0)
    k_img, k_atr, k_obj, k_par = jax.random.split(key, 4)

    image = jax.random.normal(k_img, (B, C_in, H, W), jnp.float32)           # NCHW
    atr = jax.random.randint(k_atr, (B,), 0, num_atr + 1, jnp.int32)
    obj = jax.random.randint(k_obj, (B,), 0, num_obj + 1, jnp.int32)

    params = init_params(k_par,
                         in_channels=C_in, num_atr=num_atr, num_obj=num_obj,
                         image_embedding=image_embedding,
                         class_embedding=class_embedding,
                         projection_dim=projection_dim)

    loss = jax.jit(ccip_forward)(params, image, atr, obj)
    loss = jax.block_until_ready(loss)
    assert loss.shape == () and bool(jnp.isfinite(loss))
    print("KERNEL_OK")
</pallas_src>

<mosaic_0001>
module attributes {stable_mosaic.version = 11 : i64} {
  func.func @fused_ccip_kernel(%arg0: i32, %arg1: memref<8x256xbf16, #tpu.memory_space<vmem>>, %arg2: memref<8x256xbf16, #tpu.memory_space<vmem>>, %arg3: memref<256x256xbf16, #tpu.memory_space<vmem>>, %arg4: memref<256x256xbf16, #tpu.memory_space<vmem>>, %arg5: memref<8x256xf32, #tpu.memory_space<vmem>>, %arg6: memref<256x256xbf16, #tpu.memory_space<vmem>>, %arg7: memref<256x256xbf16, #tpu.memory_space<vmem>>, %arg8: memref<8x256xf32, #tpu.memory_space<vmem>>, %arg9: memref<1x1xf32, #tpu.memory_space<smem>>, %arg10: memref<1x1xf32, #tpu.memory_space<smem>>, %arg11: memref<8x512xbf16, #tpu.memory_space<vmem>>) attributes {dimension_semantics = [#tpu.dimension_semantics<arbitrary>], iteration_bounds = array<i64: 1>, scalar_prefetch = 0 : i64, scratch_operands = 1 : i64, tpu.core_type = #tpu.core_type<tc>, window_params = [{transform_indices = @transform_0, window_bounds = array<i64: 8, 256>}, {transform_indices = @transform_1, window_bounds = array<i64: 8, 256>}, {pipeline_mode = #tpu.pipeline_mode<synchronous>, transform_indices = @transform_2, window_bounds = array<i64: 256, 256>}, {pipeline_mode = #tpu.pipeline_mode<synchronous>, transform_indices = @transform_3, window_bounds = array<i64: 256, 256>}, {pipeline_mode = #tpu.pipeline_mode<synchronous>, transform_indices = @transform_4, window_bounds = array<i64: 8, 256>}, {pipeline_mode = #tpu.pipeline_mode<synchronous>, transform_indices = @transform_5, window_bounds = array<i64: 256, 256>}, {pipeline_mode = #tpu.pipeline_mode<synchronous>, transform_indices = @transform_6, window_bounds = array<i64: 256, 256>}, {pipeline_mode = #tpu.pipeline_mode<synchronous>, transform_indices = @transform_7, window_bounds = array<i64: 8, 256>}, {transform_indices = @transform_8, window_bounds = array<i64: 1, 1>}, {transform_indices = @transform_9, window_bounds = array<i64: 1, 1>}]} {
    %c0 = arith.constant 0 : index
    %c0_0 = arith.constant 0 : index
    %0 = vector.load %arg5[%c0, %c0_0] : memref<8x256xf32, #tpu.memory_space<vmem>>, vector<8x256xf32>
    %1 = vector.extract_strided_slice %0 {offsets = [0, 0], sizes = [1, 256], strides = [1, 1]} : vector<8x256xf32> to vector<1x256xf32>
    %2 = vector.extract_strided_slice %0 {offsets = [1, 0], sizes = [1, 256], strides = [1, 1]} : vector<8x256xf32> to vector<1x256xf32>
    %3 = vector.extract_strided_slice %0 {offsets = [2, 0], sizes = [1, 256], strides = [1, 1]} : vector<8x256xf32> to vector<1x256xf32>
    %4 = vector.extract_strided_slice %0 {offsets = [3, 0], sizes = [1, 256], strides = [1, 1]} : vector<8x256xf32> to vector<1x256xf32>
    %c0_1 = arith.constant 0 : index
    %c0_2 = arith.constant 0 : index
    %5 = vector.load %arg1[%c0_1, %c0_2] : memref<8x256xbf16, #tpu.memory_space<vmem>>, vector<8x256xbf16>
    %c0_3 = arith.constant 0 : index
    %c0_4 = arith.constant 0 : index
    %6 = vector.load %arg3[%c0_3, %c0_4] : memref<256x256xbf16, #tpu.memory_space<vmem>>, vector<256x256xbf16>
    %cst = arith.constant dense<0.000000e+00> : vector<8x256xf32>
    %7 = tpu.matmul %5, %6, %cst {dimension_numbers = #tpu.dot_dimension_numbers<[1], [0], [0], [1], [0, 0, 1, 1], [], []>} : vector<8x256xbf16>, vector<256x256xbf16>, vector<8x256xf32> -> vector<8x256xf32>
    %8 = vector.broadcast %1 : vector<1x256xf32> to vector<8x256xf32>
    %9 = arith.addf %7, %8 : vector<8x256xf32>
    %10 = arith.mulf %9, %9 : vector<8x256xf32>
    %11 = arith.mulf %9, %10 : vector<8x256xf32>
    %cst_5 = arith.constant 4.471500e-02 : f32
    %12 = vector.broadcast %cst_5 : f32 to vector<8x256xf32>
    %13 = arith.mulf %12, %11 : vector<8x256xf32>
    %14 = arith.addf %9, %13 : vector<8x256xf32>
    %cst_6 = arith.constant 0.797884583 : f32
    %15 = vector.broadcast %cst_6 : f32 to vector<8x256xf32>
    %16 = arith.mulf %15, %14 : vector<8x256xf32>
    %17 = math.tanh %16 : vector<8x256xf32>
    %cst_7 = arith.constant 1.000000e+00 : f32
    %18 = vector.broadcast %cst_7 : f32 to vector<8x256xf32>
    %19 = arith.addf %18, %17 : vector<8x256xf32>
    %cst_8 = arith.constant 5.000000e-01 : f32
    %20 = vector.broadcast %cst_8 : f32 to vector<8x256xf32>
    %21 = arith.mulf %20, %19 : vector<8x256xf32>
    %22 = arith.mulf %9, %21 : vector<8x256xf32>
    %23 = arith.truncf %22 : vector<8x256xf32> to vector<8x256xbf16>
    %c0_9 = arith.constant 0 : index
    %c0_10 = arith.constant 0 : index
    %24 = vector.load %arg4[%c0_9, %c0_10] : memref<256x256xbf16, #tpu.memory_space<vmem>>, vector<256x256xbf16>
    %cst_11 = arith.constant dense<0.000000e+00> : vector<8x256xf32>
    %25 = tpu.matmul %23, %24, %cst_11 {dimension_numbers = #tpu.dot_dimension_numbers<[1], [0], [0], [1], [0, 0, 1, 1], [], []>} : vector<8x256xbf16>, vector<256x256xbf16>, vector<8x256xf32> -> vector<8x256xf32>
    %26 = vector.broadcast %2 : vector<1x256xf32> to vector<8x256xf32>
    %27 = arith.addf %25, %26 : vector<8x256xf32>
    %28 = arith.addf %27, %9 : vector<8x256xf32>
    %cst_12 = arith.constant dense<0.000000e+00> : vector<8xf32>
    %29 = vector.multi_reduction <add>, %28, %cst_12 [1] : vector<8x256xf32> to vector<8xf32>
    %30 = vector.shape_cast %29 : vector<8xf32> to vector<8x1xf32>
    %cst_13 = arith.constant 2.560000e+02 : f32
    %31 = vector.broadcast %cst_13 : f32 to vector<8x1xf32>
    %32 = arith.divf %30, %31 : vector<8x1xf32>
    %33 = vector.broadcast %32 : vector<8x1xf32> to vector<8x256xf32>
    %34 = arith.subf %28, %33 : vector<8x256xf32>
    %35 = arith.mulf %34, %34 : vector<8x256xf32>
    %cst_14 = arith.constant dense<0.000000e+00> : vector<8xf32>
    %36 = vector.multi_reduction <add>, %35, %cst_14 [1] : vector<8x256xf32> to vector<8xf32>
    %37 = vector.shape_cast %36 : vector<8xf32> to vector<8x1xf32>
    %cst_15 = arith.constant 2.560000e+02 : f32
    %38 = vector.broadcast %cst_15 : f32 to vector<8x1xf32>
    %39 = arith.divf %37, %38 : vector<8x1xf32>
    %cst_16 = arith.constant 9.99999974E-6 : f32
    %40 = vector.broadcast %cst_16 : f32 to vector<8x1xf32>
    %41 = arith.addf %39, %40 : vector<8x1xf32>
    %42 = math.rsqrt %41 : vector<8x1xf32>
    %43 = vector.broadcast %42 : vector<8x1xf32> to vector<8x256xf32>
    %44 = arith.mulf %34, %43 : vector<8x256xf32>
    %45 = vector.broadcast %3 : vector<1x256xf32> to vector<8x256xf32>
    %46 = arith.mulf %44, %45 : vector<8x256xf32>
    %47 = vector.broadcast %4 : vector<1x256xf32> to vector<8x256xf32>
    %48 = arith.addf %46, %47 : vector<8x256xf32>
    %c0_17 = arith.constant 0 : index
    %c0_18 = arith.constant 0 : index
    %49 = vector.load %arg8[%c0_17, %c0_18] : memref<8x256xf32, #tpu.memory_space<vmem>>, vector<8x256xf32>
    %50 = vector.extract_strided_slice %49 {offsets = [0, 0], sizes = [1, 256], strides = [1, 1]} : vector<8x256xf32> to vector<1x256xf32>
    %51 = vector.extract_strided_slice %49 {offsets = [1, 0], sizes = [1, 256], strides = [1, 1]} : vector<8x256xf32> to vector<1x256xf32>
    %52 = vector.extract_strided_slice %49 {offsets = [2, 0], sizes = [1, 256], strides = [1, 1]} : vector<8x256xf32> to vector<1x256xf32>
    %53 = vector.extract_strided_slice %49 {offsets = [3, 0], sizes = [1, 256], strides = [1, 1]} : vector<8x256xf32> to vector<1x256xf32>
    %c0_19 = arith.constant 0 : index
    %c0_20 = arith.constant 0 : index
    %54 = vector.load %arg2[%c0_19, %c0_20] : memref<8x256xbf16, #tpu.memory_space<vmem>>, vector<8x256xbf16>
    %c0_21 = arith.constant 0 : index
    %c0_22 = arith.constant 0 : index
    %55 = vector.load %arg6[%c0_21, %c0_22] : memref<256x256xbf16, #tpu.memory_space<vmem>>, vector<256x256xbf16>
    %cst_23 = arith.constant dense<0.000000e+00> : vector<8x256xf32>
    %56 = tpu.matmul %54, %55, %cst_23 {dimension_numbers = #tpu.dot_dimension_numbers<[1], [0], [0], [1], [0, 0, 1, 1], [], []>} : vector<8x256xbf16>, vector<256x256xbf16>, vector<8x256xf32> -> vector<8x256xf32>
    %57 = vector.broadcast %50 : vector<1x256xf32> to vector<8x256xf32>
    %58 = arith.addf %56, %57 : vector<8x256xf32>
    %59 = arith.mulf %58, %58 : vector<8x256xf32>
    %60 = arith.mulf %58, %59 : vector<8x256xf32>
    %cst_24 = arith.constant 4.471500e-02 : f32
    %61 = vector.broadcast %cst_24 : f32 to vector<8x256xf32>
    %62 = arith.mulf %61, %60 : vector<8x256xf32>
    %63 = arith.addf %58, %62 : vector<8x256xf32>
    %cst_25 = arith.constant 0.797884583 : f32
    %64 = vector.broadcast %cst_25 : f32 to vector<8x256xf32>
    %65 = arith.mulf %64, %63 : vector<8x256xf32>
    %66 = math.tanh %65 : vector<8x256xf32>
    %cst_26 = arith.constant 1.000000e+00 : f32
    %67 = vector.broadcast %cst_26 : f32 to vector<8x256xf32>
    %68 = arith.addf %67, %66 : vector<8x256xf32>
    %cst_27 = arith.constant 5.000000e-01 : f32
    %69 = vector.broadcast %cst_27 : f32 to vector<8x256xf32>
    %70 = arith.mulf %69, %68 : vector<8x256xf32>
    %71 = arith.mulf %58, %70 : vector<8x256xf32>
    %72 = arith.truncf %71 : vector<8x256xf32> to vector<8x256xbf16>
    %c0_28 = arith.constant 0 : index
    %c0_29 = arith.constant 0 : index
    %73 = vector.load %arg7[%c0_28, %c0_29] : memref<256x256xbf16, #tpu.memory_space<vmem>>, vector<256x256xbf16>
    %cst_30 = arith.constant dense<0.000000e+00> : vector<8x256xf32>
    %74 = tpu.matmul %72, %73, %cst_30 {dimension_numbers = #tpu.dot_dimension_numbers<[1], [0], [0], [1], [0, 0, 1, 1], [], []>} : vector<8x256xbf16>, vector<256x256xbf16>, vector<8x256xf32> -> vector<8x256xf32>
    %75 = vector.broadcast %51 : vector<1x256xf32> to vector<8x256xf32>
    %76 = arith.addf %74, %75 : vector<8x256xf32>
    %77 = arith.addf %76, %58 : vector<8x256xf32>
    %cst_31 = arith.constant dense<0.000000e+00> : vector<8xf32>
    %78 = vector.multi_reduction <add>, %77, %cst_31 [1] : vector<8x256xf32> to vector<8xf32>
    %79 = vector.shape_cast %78 : vector<8xf32> to vector<8x1xf32>
    %cst_32 = arith.constant 2.560000e+02 : f32
    %80 = vector.broadcast %cst_32 : f32 to vector<8x1xf32>
    %81 = arith.divf %79, %80 : vector<8x1xf32>
    %82 = vector.broadcast %81 : vector<8x1xf32> to vector<8x256xf32>
    %83 = arith.subf %77, %82 : vector<8x256xf32>
    %84 = arith.mulf %83, %83 : vector<8x256xf32>
    %cst_33 = arith.constant dense<0.000000e+00> : vector<8xf32>
    %85 = vector.multi_reduction <add>, %84, %cst_33 [1] : vector<8x256xf32> to vector<8xf32>
    %86 = vector.shape_cast %85 : vector<8xf32> to vector<8x1xf32>
    %cst_34 = arith.constant 2.560000e+02 : f32
    %87 = vector.broadcast %cst_34 : f32 to vector<8x1xf32>
    %88 = arith.divf %86, %87 : vector<8x1xf32>
    %cst_35 = arith.constant 9.99999974E-6 : f32
    %89 = vector.broadcast %cst_35 : f32 to vector<8x1xf32>
    %90 = arith.addf %88, %89 : vector<8x1xf32>
    %91 = math.rsqrt %90 : vector<8x1xf32>
    %92 = vector.broadcast %91 : vector<8x1xf32> to vector<8x256xf32>
    %93 = arith.mulf %83, %92 : vector<8x256xf32>
    %94 = vector.broadcast %52 : vector<1x256xf32> to vector<8x256xf32>
    %95 = arith.mulf %93, %94 : vector<8x256xf32>
    %96 = vector.broadcast %53 : vector<1x256xf32> to vector<8x256xf32>
    %97 = arith.addf %95, %96 : vector<8x256xf32>
    %c8_i32 = arith.constant 8 : i32
    %98 = arith.muli %arg0, %c8_i32 : i32
    %99 = tpu.assume_multiple %98, 8 : i32
    %100 = arith.truncf %48 : vector<8x256xf32> to vector<8x256xbf16>
    %101 = arith.index_cast %99 : i32 to index
    %c0_36 = arith.constant 0 : index
    %102 = vector.load %arg11[%101, %c0_36] : memref<8x512xbf16, #tpu.memory_space<vmem>>, vector<8x256xbf16>
    tpu.vector_store %arg11[%101, %c0_36], %100 {strides = array<i32>} : memref<8x512xbf16, #tpu.memory_space<vmem>>, vector<8x256xbf16>,
    %103 = arith.truncf %97 : vector<8x256xf32> to vector<8x256xbf16>
    %104 = arith.index_cast %99 : i32 to index
    %c256 = arith.constant 256 : index
    %105 = vector.load %arg11[%104, %c256] : memref<8x512xbf16, #tpu.memory_space<vmem>>, vector<8x256xbf16>
    tpu.vector_store %arg11[%104, %c256], %103 {strides = array<i32>} : memref<8x512xbf16, #tpu.memory_space<vmem>>, vector<8x256xbf16>,
    %c0_i32 = arith.constant 0 : i32
    %106 = arith.cmpi eq, %arg0, %c0_i32 : i32
    %107 = arith.extui %106 : i1 to i32
    %c0_i32_37 = arith.constant 0 : i32
    %108 = arith.cmpi ne, %107, %c0_i32_37 : i32
    scf.if %108 {
      %c0_38 = arith.constant 0 : index
      %c0_39 = arith.constant 0 : index
      %109 = vector.load %arg11[%c0_38, %c0_39] : memref<8x512xbf16, #tpu.memory_space<vmem>>, vector<8x512xbf16>
      %110 = vector.extract_strided_slice %109 {offsets = [0, 0], sizes = [8, 256], strides = [1, 1]} : vector<8x512xbf16> to vector<8x256xbf16>
      %111 = vector.extract_strided_slice %109 {offsets = [0, 256], sizes = [8, 256], strides = [1, 1]} : vector<8x512xbf16> to vector<8x256xbf16>
      %c0_40 = arith.constant 0 : index
      %c0_41 = arith.constant 0 : index
      %112 = memref.load %arg9[%c0_40, %c0_41] : memref<1x1xf32, #tpu.memory_space<smem>>
      %113 = math.exp %112 : f32
      %cst_42 = arith.constant dense<0.000000e+00> : vector<8x8xf32>
      %114 = tpu.matmul %109, %109, %cst_42 {dimension_numbers = #tpu.dot_dimension_numbers<[1], [1], [0], [0], [0, 0, 1, 0], [], []>} : vector<8x512xbf16>, vector<8x512xbf16>, vector<8x8xf32> -> vector<8x8xf32>
      %cst_43 = arith.constant dense<0.000000e+00> : vector<8x8xf32>
      %115 = tpu.matmul %111, %110, %cst_43 {dimension_numbers = #tpu.dot_dimension_numbers<[1], [1], [0], [0], [0, 0, 1, 0], [], []>} : vector<8x256xbf16>, vector<8x256xbf16>, vector<8x8xf32> -> vector<8x8xf32>
      %116 = vector.broadcast %113 : f32 to vector<8x8xf32>
      %117 = arith.mulf %116, %115 : vector<8x8xf32>
      %cst_44 = arith.constant 5.000000e-01 : f32
      %118 = arith.mulf %cst_44, %113 : f32
      %119 = vector.broadcast %118 : f32 to vector<8x8xf32>
      %120 = arith.mulf %119, %114 : vector<8x8xf32>
      %cst_45 = arith.constant dense<0xFF800000> : vector<8xf32>
      %121 = vector.multi_reduction <maximumf>, %120, %cst_45 [1] : vector<8x8xf32> to vector<8xf32>
      %122 = vector.shape_cast %121 : vector<8xf32> to vector<8x1xf32>
      %123 = vector.broadcast %122 : vector<8x1xf32> to vector<8x8xf32>
      %124 = arith.subf %120, %123 : vector<8x8xf32>
      %125 = math.exp %124 : vector<8x8xf32>
      %cst_46 = arith.constant dense<0.000000e+00> : vector<8xf32>
      %126 = vector.multi_reduction <add>, %125, %cst_46 [1] : vector<8x8xf32> to vector<8xf32>
      %127 = vector.shape_cast %126 : vector<8xf32> to vector<8x1xf32>
      %128 = tpu.reciprocal %127 {approx = true} : vector<8x1xf32> -> vector<8x1xf32>
      %129 = arith.mulf %125, %117 : vector<8x8xf32>
      %cst_47 = arith.constant dense<0.000000e+00> : vector<8xf32>
      %130 = vector.multi_reduction <add>, %129, %cst_47 [1] : vector<8x8xf32> to vector<8xf32>
      %131 = vector.shape_cast %130 : vector<8xf32> to vector<8x1xf32>
      %132 = arith.mulf %131, %128 : vector<8x1xf32>
      %133 = vector.shape_cast %132 : vector<8x1xf32> to vector<1x8x1xf32>
      %cst_48 = arith.constant dense<0.000000e+00> : vector<1xf32>
      %134 = vector.multi_reduction <add>, %133, %cst_48 [1, 2] : vector<1x8x1xf32> to vector<1xf32>
      %135 = vector.shape_cast %134 : vector<1xf32> to vector<1x1x1xf32>
      %136 = vector.extract %135[0, 0, 0] : f32 from vector<1x1x1xf32>
      %137 = vector.broadcast %128 : vector<8x1xf32> to vector<8x8xf32>
      %138 = arith.mulf %125, %137 : vector<8x8xf32>
      %cst_49 = arith.constant dense<0.000000e+00> : vector<8xf32>
      %139 = vector.multi_reduction <add>, %138, %cst_49 [0] : vector<8x8xf32> to vector<8xf32>
      %140 = vector.shape_cast %139 : vector<8xf32> to vector<1x8xf32>
      %cst_50 = arith.constant dense<0xFF800000> : vector<8xf32>
      %141 = vector.multi_reduction <maximumf>, %117, %cst_50 [1] : vector<8x8xf32> to vector<8xf32>
      %142 = vector.shape_cast %141 : vector<8xf32> to vector<8x1xf32>
      %143 = vector.broadcast %142 : vector<8x1xf32> to vector<8x8xf32>
      %144 = arith.subf %117, %143 : vector<8x8xf32>
      %145 = math.exp %144 : vector<8x8xf32>
      %cst_51 = arith.constant dense<0.000000e+00> : vector<8xf32>
      %146 = vector.multi_reduction <add>, %145, %cst_51 [1] : vector<8x8xf32> to vector<8xf32>
      %147 = vector.shape_cast %146 : vector<8xf32> to vector<8x1xf32>
      %148 = math.log %147 : vector<8x1xf32>
      %149 = arith.addf %142, %148 : vector<8x1xf32>
      %cst_52 = arith.constant dense<0xFF800000> : vector<8xf32>
      %150 = vector.multi_reduction <maximumf>, %117, %cst_52 [0] : vector<8x8xf32> to vector<8xf32>
      %151 = vector.shape_cast %150 : vector<8xf32> to vector<1x8xf32>
      %152 = vector.broadcast %151 : vector<1x8xf32> to vector<8x8xf32>
      %153 = arith.subf %117, %152 : vector<8x8xf32>
      %154 = math.exp %153 : vector<8x8xf32>
      %cst_53 = arith.constant dense<0.000000e+00> : vector<8xf32>
      %155 = vector.multi_reduction <add>, %154, %cst_53 [0] : vector<8x8xf32> to vector<8xf32>
      %156 = vector.shape_cast %155 : vector<8xf32> to vector<1x8xf32>
      %157 = math.log %156 : vector<1x8xf32>
      %158 = arith.addf %151, %157 : vector<1x8xf32>
      %159 = vector.shape_cast %149 : vector<8x1xf32> to vector<1x8x1xf32>
      %cst_54 = arith.constant dense<0.000000e+00> : vector<1xf32>
      %160 = vector.multi_reduction <add>, %159, %cst_54 [1, 2] : vector<1x8x1xf32> to vector<1xf32>
      %161 = vector.shape_cast %160 : vector<1xf32> to vector<1x1x1xf32>
      %162 = vector.extract %161[0, 0, 0] : f32 from vector<1x1x1xf32>
      %163 = arith.subf %162, %136 : f32
      %164 = arith.mulf %158, %140 : vector<1x8xf32>
      %165 = vector.shape_cast %164 : vector<1x8xf32> to vector<1x1x8xf32>
      %cst_55 = arith.constant dense<0.000000e+00> : vector<1xf32>
      %166 = vector.multi_reduction <add>, %165, %cst_55 [1, 2] : vector<1x1x8xf32> to vector<1xf32>
      %167 = vector.shape_cast %166 : vector<1xf32> to vector<1x1x1xf32>
      %168 = vector.extract %167[0, 0, 0] : f32 from vector<1x1x1xf32>
      %169 = arith.subf %168, %136 : f32
      %170 = arith.addf %163, %169 : f32
      %cst_56 = arith.constant 6.250000e-02 : f32
      %171 = arith.mulf %170, %cst_56 : f32
      %c0_57 = arith.constant 0 : index
      %c0_58 = arith.constant 0 : index
      %172 = memref.load %arg10[%c0_57, %c0_58] : memref<1x1xf32, #tpu.memory_space<smem>>
      memref.store %171, %arg10[%c0_57, %c0_58] : memref<1x1xf32, #tpu.memory_space<smem>>
    } else {
    }
    return
  }
  func.func @transform_0(%arg0: i32) -> (i32, i32) {
    %c0_i32 = arith.constant 0 : i32
    %c0_i32_0 = arith.constant 0 : i32
    return %arg0, %c0_i32 : i32, i32
  }
  func.func @transform_1(%arg0: i32) -> (i32, i32) {
    %c0_i32 = arith.constant 0 : i32
    %c0_i32_0 = arith.constant 0 : i32
    return %arg0, %c0_i32 : i32, i32
  }
  func.func @transform_2(%arg0: i32) -> (i32, i32) {
    %c0_i32 = arith.constant 0 : i32
    %c0_i32_0 = arith.constant 0 : i32
    %c0_i32_1 = arith.constant 0 : i32
    return %c0_i32, %c0_i32_0 : i32, i32
  }
  func.func @transform_3(%arg0: i32) -> (i32, i32) {
    %c0_i32 = arith.constant 0 : i32
    %c0_i32_0 = arith.constant 0 : i32
    %c0_i32_1 = arith.constant 0 : i32
    return %c0_i32, %c0_i32_0 : i32, i32
  }
  func.func @transform_4(%arg0: i32) -> (i32, i32) {
    %c0_i32 = arith.constant 0 : i32
    %c0_i32_0 = arith.constant 0 : i32
    %c0_i32_1 = arith.constant 0 : i32
    return %c0_i32, %c0_i32_0 : i32, i32
  }
  func.func @transform_5(%arg0: i32) -> (i32, i32) {
    %c0_i32 = arith.constant 0 : i32
    %c0_i32_0 = arith.constant 0 : i32
    %c0_i32_1 = arith.constant 0 : i32
    return %c0_i32, %c0_i32_0 : i32, i32
  }
  func.func @transform_6(%arg0: i32) -> (i32, i32) {
    %c0_i32 = arith.constant 0 : i32
    %c0_i32_0 = arith.constant 0 : i32
    %c0_i32_1 = arith.constant 0 : i32
    return %c0_i32, %c0_i32_0 : i32, i32
  }
  func.func @transform_7(%arg0: i32) -> (i32, i32) {
    %c0_i32 = arith.constant 0 : i32
    %c0_i32_0 = arith.constant 0 : i32
    %c0_i32_1 = arith.constant 0 : i32
    return %c0_i32, %c0_i32_0 : i32, i32
  }
  func.func @transform_8(%arg0: i32) -> (i32, i32) {
    %c0_i32 = arith.constant 0 : i32
    %c0_i32_0 = arith.constant 0 : i32
    %c0_i32_1 = arith.constant 0 : i32
    return %c0_i32, %c0_i32_0 : i32, i32
  }
  func.func @transform_9(%arg0: i32) -> (i32, i32) {
    %c0_i32 = arith.constant 0 : i32
    %c0_i32_0 = arith.constant 0 : i32
    %c0_i32_1 = arith.constant 0 : i32
    return %c0_i32, %c0_i32_0 : i32, i32
  }
}

</mosaic_0001>

<llo_original>
// kernel: ccip_forward.1
$region0: #{ccip_forward.1}
  #allocation0 [shape = 'u32[]', space=smem, size = 0x4, offset = 0x4, fixed_abs, tag = 'smem constant byte address 0x4 - core index']
  #allocation1 [shape = 'u32[144,128]{1,0:T(1,128)}', space=vmem, size = 0x12000, scoped, tag = 'internal scratch']
  #allocation2 [shape = 'bf16[8,512]{1,0:T(8,128)(2,1)}', space=vmem, size = 0x2000, scoped, tag = 'scratch operand']
  #allocation3 [shape = 'f32[1,1]{1,0:T(1,128)S(6)}', space=smem, size = 0x200, scoped, tag = 'scoped memory for ccip_forward.1']
  %s0 = inlined_call_operand.vmem [shape: bf16[8,256], index: 0, kind: input, shape index: {}]
  %s1 = inlined_call_operand.vmem [shape: bf16[8,256], index: 1, kind: input, shape index: {}]
  %s2 = inlined_call_operand.vmem [shape: bf16[256,256], index: 2, kind: input, shape index: {}]
  %s3 = inlined_call_operand.vmem [shape: bf16[256,256], index: 3, kind: input, shape index: {}]
  %s4 = inlined_call_operand.vmem [shape: f32[8,256], index: 4, kind: input, shape index: {}]
  %s5 = inlined_call_operand.vmem [shape: bf16[256,256], index: 5, kind: input, shape index: {}]
  %s6 = inlined_call_operand.vmem [shape: bf16[256,256], index: 6, kind: input, shape index: {}]
  %s7 = inlined_call_operand.vmem [shape: f32[8,256], index: 7, kind: input, shape index: {}]
  %s8 = inlined_call_operand.<no memory space> [shape: f32[1,1], index: 8, kind: input, shape index: {}]
  %s9 = inlined_call_operand.hbm [shape: f32[1,1], index: 9, kind: output, shape index: {}]
  %s10 = sld [smem:[#allocation0]]
  $region50: #{ccip_forward.1} parent=0
    _
  %s12 = ssub.s32 1, %s10
  %s13 = scalar_select 0, %s12, %s10
  %14 = sst [smem:[#allocation3]] %s8
  $region1: #{ccip_forward.1} parent=0
    #allocation4 [shape = 'u8[512]{0}', space=smem, size = 0x200, scoped, tag = 'output window, operand 0, single buffered']
    #allocation5 [shape = 's32[1]{0}', space=sflag, size = 0x4, scoped, tag = 'scoped memory for ccip_forward.1']
    %15 = vsyncpa [#allocation5], 0
    // Predicated region
    $region2: #{ccip_forward.1} parent=1 // pred_check
      _
    $region3: #{ccip_forward.1} parent=1 // pred_check_branch
      %17 = sbr.rel (0) target = $region5
    $region4: #{ccip_forward.1} parent=1 // pred_region
      _
    $region5: #{ccip_forward.1} parent=1 // pred_fallthru
      _
    // Predicated region
    $region6: #{ccip_forward.1} parent=1 // pred_check
      _
    $region7: #{ccip_forward.1} parent=1 // pred_check_branch
      %19 = sbr.rel (0) target = $region9
    $region8: #{ccip_forward.1} parent=1 // pred_region
      _
    $region9: #{ccip_forward.1} parent=1 // pred_fallthru
      _
    // Predicated region
    $region10: #{ccip_forward.1} parent=1 // pred_check
      _
    $region11: #{ccip_forward.1} parent=1 // pred_check_branch
      %21 = sbr.rel (0) target = $region13
    $region12: #{ccip_forward.1} parent=1 // pred_region
      _
    $region13: #{ccip_forward.1} parent=1 // pred_fallthru
      _
    // Predicated region
    $region14: #{ccip_forward.1} parent=1 // pred_check
      _
    $region15: #{ccip_forward.1} parent=1 // pred_check_branch
      %23 = sbr.rel (0) target = $region17
    $region16: #{ccip_forward.1} parent=1 // pred_region
      _
    $region17: #{ccip_forward.1} parent=1 // pred_fallthru
      _
    // Predicated region
    $region18: #{ccip_forward.1} parent=1 // pred_check
      _
    $region19: #{ccip_forward.1} parent=1 // pred_check_branch
      %25 = sbr.rel (0) target = $region21
    $region20: #{ccip_forward.1} parent=1 // pred_region
      _
    $region21: #{ccip_forward.1} parent=1 // pred_fallthru
      _
    // Predicated region
    $region22: #{ccip_forward.1} parent=1 // pred_check
      _
    $region23: #{ccip_forward.1} parent=1 // pred_check_branch
      %27 = sbr.rel (0) target = $region25
    $region24: #{ccip_forward.1} parent=1 // pred_region
      _
    $region25: #{ccip_forward.1} parent=1 // pred_fallthru
      _
    // Predicated region
    $region26: #{ccip_forward.1} parent=1 // pred_check
      _
    $region27: #{ccip_forward.1} parent=1 // pred_check_branch
      %29 = sbr.rel (0) target = $region29
    $region28: #{ccip_forward.1} parent=1 // pred_region
      _
    $region29: #{ccip_forward.1} parent=1 // pred_fallthru
      _
    // Predicated region
    $region30: #{ccip_forward.1} parent=1 // pred_check
      _
    $region31: #{ccip_forward.1} parent=1 // pred_check_branch
      %31 = sbr.rel (0) target = $region33
    $region32: #{ccip_forward.1} parent=1 // pred_region
      _
    $region33: #{ccip_forward.1} parent=1 // pred_fallthru
      _
    // Predicated region
    $region34: #{ccip_forward.1} parent=1 // pred_check
      _
    $region35: #{ccip_forward.1} parent=1 // pred_check_branch
      %33 = sbr.rel (0) target = $region37
    $region36: #{ccip_forward.1} parent=1 // pred_region
      _
    $region37: #{ccip_forward.1} parent=1 // pred_fallthru
      _
    %v35 = vld [vmem:[%s4] sm:$0xff]
    %v36 = vld [vmem:[%s4 + $0x8] sm:$0xff]
    %v37 = vld [vmem:[%s0] sm:$0xff]
    %v38 = vld [vmem:[%s2] sm:$0xff]
    %v39 = vld [vmem:[%s2 + $0x8] sm:$0xff]
    %v40 = vld [vmem:[%s2 + $0x10] sm:$0xff]
    %v41 = vld [vmem:[%s2 + $0x18] sm:$0xff]
    %v42 = vld [vmem:[%s2 + $0x20] sm:$0xff]
    %v43 = vld [vmem:[%s2 + $0x28] sm:$0xff]
    %v44 = vld [vmem:[%s2 + $0x30] sm:$0xff]
    %v45 = vld [vmem:[%s2 + $0x38] sm:$0xff]
    %v46 = vld [vmem:[%s2 + $0x40] sm:$0xff]
    %v47 = vld [vmem:[%s2 + $0x48] sm:$0xff]
    %v48 = vld [vmem:[%s2 + $0x50] sm:$0xff]
    %v49 = vld [vmem:[%s2 + $0x58] sm:$0xff]
    %v50 = vld [vmem:[%s2 + $0x60] sm:$0xff]
    %v51 = vld [vmem:[%s2 + $0x68] sm:$0xff]
    %v52 = vld [vmem:[%s2 + $0x70] sm:$0xff]
    %v53 = vld [vmem:[%s2 + $0x78] sm:$0xff]
    %v54 = vld [vmem:[%s2 + $0x80] sm:$0xff]
    %v55 = vld [vmem:[%s2 + $0x88] sm:$0xff]
    %v56 = vld [vmem:[%s2 + $0x90] sm:$0xff]
    %v57 = vld [vmem:[%s2 + $0x98] sm:$0xff]
    %v58 = vld [vmem:[%s2 + $0xa0] sm:$0xff]
    %v59 = vld [vmem:[%s2 + $0xa8] sm:$0xff]
    %v60 = vld [vmem:[%s2 + $0xb0] sm:$0xff]
    %v61 = vld [vmem:[%s2 + $0xb8] sm:$0xff]
    %v62 = vld [vmem:[%s2 + $0xc0] sm:$0xff]
    %v63 = vld [vmem:[%s2 + $0xc8] sm:$0xff]
    %v64 = vld [vmem:[%s2 + $0xd0] sm:$0xff]
    %v65 = vld [vmem:[%s2 + $0xd8] sm:$0xff]
    %v66 = vld [vmem:[%s2 + $0xe0] sm:$0xff]
    %v67 = vld [vmem:[%s2 + $0xe8] sm:$0xff]
    %v68 = vld [vmem:[%s2 + $0xf0] sm:$0xff]
    %v69 = vld [vmem:[%s2 + $0xf8] sm:$0xff]
    %v70 = vlaneseq
    %v71 = vshrl.u32 %v70, 7
    %v72 = vsub.s32 0, %v71
    %v73 = vrot.slane %v35, %v72
    %v74 = vlaneseq
    %v75 = vshrl.u32 %v74, 7
    %v76 = vsub.s32 0, %v75
    %v77 = vrot.slane %v36, %v76
    %v79 = vunpack.c.l.b16 %v37
    %v80 = vunpack.c.h.b16 %v37
    %v81 = vpack.c.b16 %v79, %v79
    %v82 = vpack.c.b16 %v80, %v80
    %v117 = vunpack.c.l.b16 %v38
    %v118 = vunpack.c.h.b16 %v38
    %v119 = vunpack.c.l.b16 %v39
    %v120 = vunpack.c.h.b16 %v39
    %v121 = vunpack.c.l.b16 %v40
    %v122 = vunpack.c.h.b16 %v40
    %v123 = vunpack.c.l.b16 %v41
    %v124 = vunpack.c.h.b16 %v41
    %v125 = vunpack.c.l.b16 %v42
    %v126 = vunpack.c.h.b16 %v42
    %v127 = vunpack.c.l.b16 %v43
    %v128 = vunpack.c.h.b16 %v43
    %v129 = vunpack.c.l.b16 %v44
    %v130 = vunpack.c.h.b16 %v44
    %v131 = vunpack.c.l.b16 %v45
    %v132 = vunpack.c.h.b16 %v45
    %v133 = vunpack.c.l.b16 %v46
    %v134 = vunpack.c.h.b16 %v46
    %v135 = vunpack.c.l.b16 %v47
    %v136 = vunpack.c.h.b16 %v47
    %v137 = vunpack.c.l.b16 %v48
    %v138 = vunpack.c.h.b16 %v48
    %v139 = vunpack.c.l.b16 %v49
    %v140 = vunpack.c.h.b16 %v49
    %v141 = vunpack.c.l.b16 %v50
    %v142 = vunpack.c.h.b16 %v50
    %v143 = vunpack.c.l.b16 %v51
    %v144 = vunpack.c.h.b16 %v51
    %v145 = vunpack.c.l.b16 %v52
    %v146 = vunpack.c.h.b16 %v52
    %v147 = vunpack.c.l.b16 %v53
    %v148 = vunpack.c.h.b16 %v53
    %v149 = vunpack.c.l.b16 %v54
    %v150 = vunpack.c.h.b16 %v54
    %v151 = vunpack.c.l.b16 %v55
    %v152 = vunpack.c.h.b16 %v55
    %v153 = vunpack.c.l.b16 %v56
    %v154 = vunpack.c.h.b16 %v56
    %v155 = vunpack.c.l.b16 %v57
    %v156 = vunpack.c.h.b16 %v57
    %v157 = vunpack.c.l.b16 %v58
    %v158 = vunpack.c.h.b16 %v58
    %v159 = vunpack.c.l.b16 %v59
    %v160 = vunpack.c.h.b16 %v59
    %v161 = vunpack.c.l.b16 %v60
    %v162 = vunpack.c.h.b16 %v60
    %v163 = vunpack.c.l.b16 %v61
    %v164 = vunpack.c.h.b16 %v61
    %v165 = vunpack.c.l.b16 %v62
    %v166 = vunpack.c.h.b16 %v62
    %v167 = vunpack.c.l.b16 %v63
    %v168 = vunpack.c.h.b16 %v63
    %v169 = vunpack.c.l.b16 %v64
    %v170 = vunpack.c.h.b16 %v64
    %v171 = vunpack.c.l.b16 %v65
    %v172 = vunpack.c.h.b16 %v65
    %v173 = vunpack.c.l.b16 %v66
    %v174 = vunpack.c.h.b16 %v66
    %v175 = vunpack.c.l.b16 %v67
    %v176 = vunpack.c.h.b16 %v67
    %v177 = vunpack.c.l.b16 %v68
    %v178 = vunpack.c.h.b16 %v68
    %v179 = vunpack.c.l.b16 %v69
    %v180 = vunpack.c.h.b16 %v69
    %v181 = vpack.c.b16 %v119, %v117
    %v182 = vpack.c.b16 %v120, %v118
    %v183 = vpack.c.b16 %v123, %v121
    %v184 = vpack.c.b16 %v124, %v122
    %v185 = vpack.c.b16 %v127, %v125
    %v186 = vpack.c.b16 %v128, %v126
    %v187 = vpack.c.b16 %v131, %v129
    %v188 = vpack.c.b16 %v132, %v130
    %v189 = vpack.c.b16 %v135, %v133
    %v190 = vpack.c.b16 %v136, %v134
    %v191 = vpack.c.b16 %v139, %v137
    %v192 = vpack.c.b16 %v140, %v138
    %v193 = vpack.c.b16 %v143, %v141
    %v194 = vpack.c.b16 %v144, %v142
    %v195 = vpack.c.b16 %v147, %v145
    %v196 = vpack.c.b16 %v148, %v146
    %v197 = vpack.c.b16 %v151, %v149
    %v198 = vpack.c.b16 %v152, %v150
    %v199 = vpack.c.b16 %v155, %v153
    %v200 = vpack.c.b16 %v156, %v154
    %v201 = vpack.c.b16 %v159, %v157
    %v202 = vpack.c.b16 %v160, %v158
    %v203 = vpack.c.b16 %v163, %v161
    %v204 = vpack.c.b16 %v164, %v162
    %v205 = vpack.c.b16 %v167, %v165
    %v206 = vpack.c.b16 %v168, %v166
    %v207 = vpack.c.b16 %v171, %v169
    %v208 = vpack.c.b16 %v172, %v170
    %v209 = vpack.c.b16 %v175, %v173
    %v210 = vpack.c.b16 %v176, %v174
    %v211 = vpack.c.b16 %v179, %v177
    %v212 = vpack.c.b16 %v180, %v178
    %245 = vmatprep.subr.bf16.mxu0 %v182
    %246 = vmatpush1.bf16.msra.mxu0 %v181
    %247 = vmatprep.subr.bf16.mxu0 %v184
    %248 = vmatpush1.bf16.msra.mxu0 %v183
    %249 = vmatprep.subr.bf16.mxu0 %v186
    %250 = vmatpush1.bf16.msra.mxu0 %v185
    %251 = vmatprep.subr.bf16.mxu0 %v188
    %252 = vmatpush1.bf16.msra.mxu0 %v187
    %253 = vmatprep.subr.bf16.mxu0 %v190
    %254 = vmatpush1.bf16.msra.mxu0 %v189
    %255 = vmatprep.subr.bf16.mxu0 %v192
    %256 = vmatpush1.bf16.msra.mxu0 %v191
    %257 = vmatprep.subr.bf16.mxu0 %v194
    %258 = vmatpush1.bf16.msra.mxu0 %v193
    %259 = vmatprep.subr.bf16.mxu0 %v196
    %260 = vmatpush1.bf16.msra.mxu0 %v195
    %261 = vmatprep.subr.bf16.mxu0 %v198
    %262 = vmatpush1.bf16.msra.mxu0 %v197
    %263 = vmatprep.subr.bf16.mxu0 %v200
    %264 = vmatpush1.bf16.msra.mxu0 %v199
    %265 = vmatprep.subr.bf16.mxu0 %v202
    %266 = vmatpush1.bf16.msra.mxu0 %v201
    %267 = vmatprep.subr.bf16.mxu0 %v204
    %268 = vmatpush1.bf16.msra.mxu0 %v203
    %269 = vmatprep.subr.bf16.mxu0 %v206
    %270 = vmatpush1.bf16.msra.mxu0 %v205
    %271 = vmatprep.subr.bf16.mxu0 %v208
    %272 = vmatpush1.bf16.msra.mxu0 %v207
    %273 = vmatprep.subr.bf16.mxu0 %v210
    %274 = vmatpush1.bf16.msra.mxu0 %v209
    %275 = vmatprep.subr.bf16.mxu0 %v212
    %276 = vmatpush1.bf16.msra.mxu0 %v211
    %277 = vmatprep.mubr.bf16.mxu0 %v82
    %278 = vmatmul.mubr.bf16.gmra.mrb[0].mxu0 %v81
    %v279 = vpop.f32.mrb[0].mxu0
    %v280 = vadd.f32 %v73, %v279
    %v281 = vpop.f32.mrb[0].mxu0
    %v282 = vadd.f32 %v77, %v281
    %v283 = vpop.f32.mrb[0].mxu0
    %v284 = vpop.f32.mrb[0].mxu0
    %285 = vdwg.mxu0
    %v286 = vmul.f32 %v280, %v280
    %v287 = vmul.f32 %v282, %v282
    %v288 = vmul.f32 %v280, %v286
    %v289 = vmul.f32 %v282, %v287
    %v290 = vmul.f32 %v288, 0.044715
    %v291 = vmul.f32 %v289, 0.044715
    %v292 = vadd.f32 %v280, %v290
    %v293 = vadd.f32 %v282, %v291
    %v294 = vmul.f32 %v292, 0.7978846
    %v295 = vmul.f32 %v293, 0.7978846
    %v296 = vtanh.pop %v294
    %v297 = vtanh.pop %v295
    %v298 = vadd.f32 %v296, 1.0
    %v299 = vadd.f32 %v297, 1.0
    %v300 = vmul.f32 %v298, 0.5
    %v301 = vmul.f32 %v299, 0.5
    %v302 = vmul.f32 %v280, %v300
    %v303 = vmul.f32 %v282, %v301
    %v304 = vpack.c.bf16 %v302, %v302
    %v305 = vpack.c.bf16 %v303, %v303
    %v306 = vld [vmem:[%s3] sm:$0xff]
    %v307 = vld [vmem:[%s3 + $0x8] sm:$0xff]
    %v308 = vld [vmem:[%s3 + $0x10] sm:$0xff]
    %v309 = vld [vmem:[%s3 + $0x18] sm:$0xff]
    %v310 = vld [vmem:[%s3 + $0x20] sm:$0xff]
    %v311 = vld [vmem:[%s3 + $0x28] sm:$0xff]
    %v312 = vld [vmem:[%s3 + $0x30] sm:$0xff]
    %v313 = vld [vmem:[%s3 + $0x38] sm:$0xff]
    %v314 = vld [vmem:[%s3 + $0x40] sm:$0xff]
    %v315 = vld [vmem:[%s3 + $0x48] sm:$0xff]
    %v316 = vld [vmem:[%s3 + $0x50] sm:$0xff]
    %v317 = vld [vmem:[%s3 + $0x58] sm:$0xff]
    %v318 = vld [vmem:[%s3 + $0x60] sm:$0xff]
    %v319 = vld [vmem:[%s3 + $0x68] sm:$0xff]
    %v320 = vld [vmem:[%s3 + $0x70] sm:$0xff]
    %v321 = vld [vmem:[%s3 + $0x78] sm:$0xff]
    %v322 = vld [vmem:[%s3 + $0x80] sm:$0xff]
    %v323 = vld [vmem:[%s3 + $0x88] sm:$0xff]
    %v324 = vld [vmem:[%s3 + $0x90] sm:$0xff]
    %v325 = vld [vmem:[%s3 + $0x98] sm:$0xff]
    %v326 = vld [vmem:[%s3 + $0xa0] sm:$0xff]
    %v327 = vld [vmem:[%s3 + $0xa8] sm:$0xff]
    %v328 = vld [vmem:[%s3 + $0xb0] sm:$0xff]
    %v329 = vld [vmem:[%s3 + $0xb8] sm:$0xff]
    %v330 = vld [vmem:[%s3 + $0xc0] sm:$0xff]
    %v331 = vld [vmem:[%s3 + $0xc8] sm:$0xff]
    %v332 = vld [vmem:[%s3 + $0xd0] sm:$0xff]
    %v333 = vld [vmem:[%s3 + $0xd8] sm:$0xff]
    %v334 = vld [vmem:[%s3 + $0xe0] sm:$0xff]
    %v335 = vld [vmem:[%s3 + $0xe8] sm:$0xff]
    %v336 = vld [vmem:[%s3 + $0xf0] sm:$0xff]
    %v337 = vld [vmem:[%s3 + $0xf8] sm:$0xff]
    %v338 = vlaneseq
    %v339 = vshrl.u32 %v338, 7
    %v340 = vsub.s32 1, %v339
    %v341 = vrot.slane %v35, %v340
    %v342 = vlaneseq
    %v343 = vshrl.u32 %v342, 7
    %v344 = vsub.s32 1, %v343
    %v345 = vrot.slane %v36, %v344
    %v378 = vunpack.c.l.b16 %v306
    %v379 = vunpack.c.h.b16 %v306
    %v380 = vunpack.c.l.b16 %v307
    %v381 = vunpack.c.h.b16 %v307
    %v382 = vunpack.c.l.b16 %v308
    %v383 = vunpack.c.h.b16 %v308
    %v384 = vunpack.c.l.b16 %v309
    %v385 = vunpack.c.h.b16 %v309
    %v386 = vunpack.c.l.b16 %v310
    %v387 = vunpack.c.h.b16 %v310
    %v388 = vunpack.c.l.b16 %v311
    %v389 = vunpack.c.h.b16 %v311
    %v390 = vunpack.c.l.b16 %v312
    %v391 = vunpack.c.h.b16 %v312
    %v392 = vunpack.c.l.b16 %v313
    %v393 = vunpack.c.h.b16 %v313
    %v394 = vunpack.c.l.b16 %v314
    %v395 = vunpack.c.h.b16 %v314
    %v396 = vunpack.c.l.b16 %v315
    %v397 = vunpack.c.h.b16 %v315
    %v398 = vunpack.c.l.b16 %v316
    %v399 = vunpack.c.h.b16 %v316
    %v400 = vunpack.c.l.b16 %v317
    %v401 = vunpack.c.h.b16 %v317
    %v402 = vunpack.c.l.b16 %v318
    %v403 = vunpack.c.h.b16 %v318
    %v404 = vunpack.c.l.b16 %v319
    %v405 = vunpack.c.h.b16 %v319
    %v406 = vunpack.c.l.b16 %v320
    %v407 = vunpack.c.h.b16 %v320
    %v408 = vunpack.c.l.b16 %v321
    %v409 = vunpack.c.h.b16 %v321
    %v410 = vunpack.c.l.b16 %v322
    %v411 = vunpack.c.h.b16 %v322
    %v412 = vunpack.c.l.b16 %v323
    %v413 = vunpack.c.h.b16 %v323
    %v414 = vunpack.c.l.b16 %v324
    %v415 = vunpack.c.h.b16 %v324
    %v416 = vunpack.c.l.b16 %v325
    %v417 = vunpack.c.h.b16 %v325
    %v418 = vunpack.c.l.b16 %v326
    %v419 = vunpack.c.h.b16 %v326
    %v420 = vunpack.c.l.b16 %v327
    %v421 = vunpack.c.h.b16 %v327
    %v422 = vunpack.c.l.b16 %v328
    %v423 = vunpack.c.h.b16 %v328
    %v424 = vunpack.c.l.b16 %v329
    %v425 = vunpack.c.h.b16 %v329
    %v426 = vunpack.c.l.b16 %v330
    %v427 = vunpack.c.h.b16 %v330
    %v428 = vunpack.c.l.b16 %v331
    %v429 = vunpack.c.h.b16 %v331
    %v430 = vunpack.c.l.b16 %v332
    %v431 = vunpack.c.h.b16 %v332
    %v432 = vunpack.c.l.b16 %v333
    %v433 = vunpack.c.h.b16 %v333
    %v434 = vunpack.c.l.b16 %v334
    %v435 = vunpack.c.h.b16 %v334
    %v436 = vunpack.c.l.b16 %v335
    %v437 = vunpack.c.h.b16 %v335
    %v438 = vunpack.c.l.b16 %v336
    %v439 = vunpack.c.h.b16 %v336
    %v440 = vunpack.c.l.b16 %v337
    %v441 = vunpack.c.h.b16 %v337
    %v442 = vpack.c.b16 %v380, %v378
    %v443 = vpack.c.b16 %v381, %v379
    %v444 = vpack.c.b16 %v384, %v382
    %v445 = vpack.c.b16 %v385, %v383
    %v446 = vpack.c.b16 %v388, %v386
    %v447 = vpack.c.b16 %v389, %v387
    %v448 = vpack.c.b16 %v392, %v390
    %v449 = vpack.c.b16 %v393, %v391
    %v450 = vpack.c.b16 %v396, %v394
    %v451 = vpack.c.b16 %v397, %v395
    %v452 = vpack.c.b16 %v400, %v398
    %v453 = vpack.c.b16 %v401, %v399
    %v454 = vpack.c.b16 %v404, %v402
    %v455 = vpack.c.b16 %v405, %v403
    %v456 = vpack.c.b16 %v408, %v406
    %v457 = vpack.c.b16 %v409, %v407
    %v458 = vpack.c.b16 %v412, %v410
    %v459 = vpack.c.b16 %v413, %v411
    %v460 = vpack.c.b16 %v416, %v414
    %v461 = vpack.c.b16 %v417, %v415
    %v462 = vpack.c.b16 %v420, %v418
    %v463 = vpack.c.b16 %v421, %v419
    %v464 = vpack.c.b16 %v424, %v422
    %v465 = vpack.c.b16 %v425, %v423
    %v466 = vpack.c.b16 %v428, %v426
    %v467 = vpack.c.b16 %v429, %v427
    %v468 = vpack.c.b16 %v432, %v430
    %v469 = vpack.c.b16 %v433, %v431
    %v470 = vpack.c.b16 %v436, %v434
    %v471 = vpack.c.b16 %v437, %v435
    %v472 = vpack.c.b16 %v440, %v438
    %v473 = vpack.c.b16 %v441, %v439
    %506 = vmatprep.subr.bf16.mxu0 %v443
    %507 = vmatpush1.bf16.msra.mxu0 %v442
    %508 = vmatprep.subr.bf16.mxu0 %v445
    %509 = vmatpush1.bf16.msra.mxu0 %v444
    %510 = vmatprep.subr.bf16.mxu0 %v447
    %511 = vmatpush1.bf16.msra.mxu0 %v446
    %512 = vmatprep.subr.bf16.mxu0 %v449
    %513 = vmatpush1.bf16.msra.mxu0 %v448
    %514 = vmatprep.subr.bf16.mxu0 %v451
    %515 = vmatpush1.bf16.msra.mxu0 %v450
    %516 = vmatprep.subr.bf16.mxu0 %v453
    %517 = vmatpush1.bf16.msra.mxu0 %v452
    %518 = vmatprep.subr.bf16.mxu0 %v455
    %519 = vmatpush1.bf16.msra.mxu0 %v454
    %520 = vmatprep.subr.bf16.mxu0 %v457
    %521 = vmatpush1.bf16.msra.mxu0 %v456
    %522 = vmatprep.subr.bf16.mxu0 %v459
    %523 = vmatpush1.bf16.msra.mxu0 %v458
    %524 = vmatprep.subr.bf16.mxu0 %v461
    %525 = vmatpush1.bf16.msra.mxu0 %v460
    %526 = vmatprep.subr.bf16.mxu0 %v463
    %527 = vmatpush1.bf16.msra.mxu0 %v462
    %528 = vmatprep.subr.bf16.mxu0 %v465
    %529 = vmatpush1.bf16.msra.mxu0 %v464
    %530 = vmatprep.subr.bf16.mxu0 %v467
    %531 = vmatpush1.bf16.msra.mxu0 %v466
    %532 = vmatprep.subr.bf16.mxu0 %v469
    %533 = vmatpush1.bf16.msra.mxu0 %v468
    %534 = vmatprep.subr.bf16.mxu0 %v471
    %535 = vmatpush1.bf16.msra.mxu0 %v470
    %536 = vmatprep.subr.bf16.mxu0 %v473
    %537 = vmatpush1.bf16.msra.mxu0 %v472
    %538 = vmatprep.mubr.bf16.mxu0 %v305
    %539 = vmatmul.mubr.bf16.gmra.mrb[0].mxu0 %v304
    %v540 = vpop.f32.mrb[0].mxu0
    %v541 = vadd.f32 %v341, %v540
    %v542 = vpop.f32.mrb[0].mxu0
    %v543 = vadd.f32 %v345, %v542
    %v544 = vpop.f32.mrb[0].mxu0
    %v545 = vpop.f32.mrb[0].mxu0
    %546 = vdwg.mxu0
    %v547 = vadd.f32 %v541, %v280
    %v548 = vadd.f32 %v543, %v282
    %v549 = vadd.f32 %v547, %v548
    %550 = vadd.xlane.f32.xlu0 %v549
    %v551 = vpop.xlane.xlu0 %550
    %v552 = vrcp.pop 256.0
    %v553 = vmul.f32 %v551, %v552
    %v554 = vsub.f32 %v547, %v553
    %v555 = vsub.f32 %v548, %v553
    %v556 = vmul.f32 %v554, %v554
    %v557 = vmul.f32 %v555, %v555
    %v558 = vadd.f32 %v556, %v557
    %559 = vadd.xlane.f32.xlu0 %v558
    %v560 = vpop.xlane.xlu0 %559
    %v561 = vmul.f32 %v560, %v552
    %v562 = vadd.f32 %v561, 1e-05
    %v563 = vrsqrt.pop %v562
    %v564 = vmul.f32 %v554, %v563
    %v565 = vmul.f32 %v555, %v563
    %v566 = vlaneseq
    %v567 = vshrl.u32 %v566, 7
    %v568 = vsub.s32 2, %v567
    %v569 = vrot.slane %v35, %v568
    %v570 = vlaneseq
    %v571 = vshrl.u32 %v570, 7
    %v572 = vsub.s32 2, %v571
    %v573 = vrot.slane %v36, %v572
    %v574 = vmul.f32 %v564, %v569
    %v575 = vmul.f32 %v565, %v573
    %v576 = vlaneseq
    %v577 = vshrl.u32 %v576, 7
    %v578 = vsub.s32 3, %v577
    %v579 = vrot.slane %v35, %v578
    %v580 = vlaneseq
    %v581 = vshrl.u32 %v580, 7
    %v582 = vsub.s32 3, %v581
    %v583 = vrot.slane %v36, %v582
    %v584 = vadd.f32 %v574, %v579
    %v585 = vadd.f32 %v575, %v583
    %v586 = vld [vmem:[%s7] sm:$0xff]
    %v587 = vld [vmem:[%s7 + $0x8] sm:$0xff]
    %v588 = vld [vmem:[%s1] sm:$0xff]
    %v589 = vld [vmem:[%s5] sm:$0xff]
    %v590 = vld [vmem:[%s5 + $0x8] sm:$0xff]
    %v591 = vld [vmem:[%s5 + $0x10] sm:$0xff]
    %v592 = vld [vmem:[%s5 + $0x18] sm:$0xff]
    %v593 = vld [vmem:[%s5 + $0x20] sm:$0xff]
    %v594 = vld [vmem:[%s5 + $0x28] sm:$0xff]
    %v595 = vld [vmem:[%s5 + $0x30] sm:$0xff]
    %v596 = vld [vmem:[%s5 + $0x38] sm:$0xff]
    %v597 = vld [vmem:[%s5 + $0x40] sm:$0xff]
    %v598 = vld [vmem:[%s5 + $0x48] sm:$0xff]
    %v599 = vld [vmem:[%s5 + $0x50] sm:$0xff]
    %v600 = vld [vmem:[%s5 + $0x58] sm:$0xff]
    %v601 = vld [vmem:[%s5 + $0x60] sm:$0xff]
    %v602 = vld [vmem:[%s5 + $0x68] sm:$0xff]
    %v603 = vld [vmem:[%s5 + $0x70] sm:$0xff]
    %v604 = vld [vmem:[%s5 + $0x78] sm:$0xff]
    %v605 = vld [vmem:[%s5 + $0x80] sm:$0xff]
    %v606 = vld [vmem:[%s5 + $0x88] sm:$0xff]
    %v607 = vld [vmem:[%s5 + $0x90] sm:$0xff]
    %v608 = vld [vmem:[%s5 + $0x98] sm:$0xff]
    %v609 = vld [vmem:[%s5 + $0xa0] sm:$0xff]
    %v610 = vld [vmem:[%s5 + $0xa8] sm:$0xff]
    %v611 = vld [vmem:[%s5 + $0xb0] sm:$0xff]
    %v612 = vld [vmem:[%s5 + $0xb8] sm:$0xff]
    %v613 = vld [vmem:[%s5 + $0xc0] sm:$0xff]
    %v614 = vld [vmem:[%s5 + $0xc8] sm:$0xff]
    %v615 = vld [vmem:[%s5 + $0xd0] sm:$0xff]
    %v616 = vld [vmem:[%s5 + $0xd8] sm:$0xff]
    %v617 = vld [vmem:[%s5 + $0xe0] sm:$0xff]
    %v618 = vld [vmem:[%s5 + $0xe8] sm:$0xff]
    %v619 = vld [vmem:[%s5 + $0xf0] sm:$0xff]
    %v620 = vld [vmem:[%s5 + $0xf8] sm:$0xff]
    %v621 = vlaneseq
    %v622 = vshrl.u32 %v621, 7
    %v623 = vsub.s32 0, %v622
    %v624 = vrot.slane %v586, %v623
    %v625 = vlaneseq
    %v626 = vshrl.u32 %v625, 7
    %v627 = vsub.s32 0, %v626
    %v628 = vrot.slane %v587, %v627
    %v630 = vunpack.c.l.b16 %v588
    %v631 = vunpack.c.h.b16 %v588
    %v632 = vpack.c.b16 %v630, %v630
    %v633 = vpack.c.b16 %v631, %v631
    %v668 = vunpack.c.l.b16 %v589
    %v669 = vunpack.c.h.b16 %v589
    %v670 = vunpack.c.l.b16 %v590
    %v671 = vunpack.c.h.b16 %v590
    %v672 = vunpack.c.l.b16 %v591
    %v673 = vunpack.c.h.b16 %v591
    %v674 = vunpack.c.l.b16 %v592
    %v675 = vunpack.c.h.b16 %v592
    %v676 = vunpack.c.l.b16 %v593
    %v677 = vunpack.c.h.b16 %v593
    %v678 = vunpack.c.l.b16 %v594
    %v679 = vunpack.c.h.b16 %v594
    %v680 = vunpack.c.l.b16 %v595
    %v681 = vunpack.c.h.b16 %v595
    %v682 = vunpack.c.l.b16 %v596
    %v683 = vunpack.c.h.b16 %v596
    %v684 = vunpack.c.l.b16 %v597
    %v685 = vunpack.c.h.b16 %v597
    %v686 = vunpack.c.l.b16 %v598
    %v687 = vunpack.c.h.b16 %v598
    %v688 = vunpack.c.l.b16 %v599
    %v689 = vunpack.c.h.b16 %v599
    %v690 = vunpack.c.l.b16 %v600
    %v691 = vunpack.c.h.b16 %v600
    %v692 = vunpack.c.l.b16 %v601
    %v693 = vunpack.c.h.b16 %v601
    %v694 = vunpack.c.l.b16 %v602
    %v695 = vunpack.c.h.b16 %v602
    %v696 = vunpack.c.l.b16 %v603
    %v697 = vunpack.c.h.b16 %v603
    %v698 = vunpack.c.l.b16 %v604
    %v699 = vunpack.c.h.b16 %v604
    %v700 = vunpack.c.l.b16 %v605
    %v701 = vunpack.c.h.b16 %v605
    %v702 = vunpack.c.l.b16 %v606
    %v703 = vunpack.c.h.b16 %v606
    %v704 = vunpack.c.l.b16 %v607
    %v705 = vunpack.c.h.b16 %v607
    %v706 = vunpack.c.l.b16 %v608
    %v707 = vunpack.c.h.b16 %v608
    %v708 = vunpack.c.l.b16 %v609
    %v709 = vunpack.c.h.b16 %v609
    %v710 = vunpack.c.l.b16 %v610
    %v711 = vunpack.c.h.b16 %v610
    %v712 = vunpack.c.l.b16 %v611
    %v713 = vunpack.c.h.b16 %v611
    %v714 = vunpack.c.l.b16 %v612
    %v715 = vunpack.c.h.b16 %v612
    %v716 = vunpack.c.l.b16 %v613
    %v717 = vunpack.c.h.b16 %v613
    %v718 = vunpack.c.l.b16 %v614
    %v719 = vunpack.c.h.b16 %v614
    %v720 = vunpack.c.l.b16 %v615
    %v721 = vunpack.c.h.b16 %v615
    %v722 = vunpack.c.l.b16 %v616
    %v723 = vunpack.c.h.b16 %v616
    %v724 = vunpack.c.l.b16 %v617
    %v725 = vunpack.c.h.b16 %v617
    %v726 = vunpack.c.l.b16 %v618
    %v727 = vunpack.c.h.b16 %v618
    %v728 = vunpack.c.l.b16 %v619
    %v729 = vunpack.c.h.b16 %v619
    %v730 = vunpack.c.l.b16 %v620
    %v731 = vunpack.c.h.b16 %v620
    %v732 = vpack.c.b16 %v670, %v668
    %v733 = vpack.c.b16 %v671, %v669
    %v734 = vpack.c.b16 %v674, %v672
    %v735 = vpack.c.b16 %v675, %v673
    %v736 = vpack.c.b16 %v678, %v676
    %v737 = vpack.c.b16 %v679, %v677
    %v738 = vpack.c.b16 %v682, %v680
    %v739 = vpack.c.b16 %v683, %v681
    %v740 = vpack.c.b16 %v686, %v684
    %v741 = vpack.c.b16 %v687, %v685
    %v742 = vpack.c.b16 %v690, %v688
    %v743 = vpack.c.b16 %v691, %v689
    %v744 = vpack.c.b16 %v694, %v692
    %v745 = vpack.c.b16 %v695, %v693
    %v746 = vpack.c.b16 %v698, %v696
    %v747 = vpack.c.b16 %v699, %v697
    %v748 = vpack.c.b16 %v702, %v700
    %v749 = vpack.c.b16 %v703, %v701
    %v750 = vpack.c.b16 %v706, %v704
    %v751 = vpack.c.b16 %v707, %v705
    %v752 = vpack.c.b16 %v710, %v708
    %v753 = vpack.c.b16 %v711, %v709
    %v754 = vpack.c.b16 %v714, %v712
    %v755 = vpack.c.b16 %v715, %v713
    %v756 = vpack.c.b16 %v718, %v716
    %v757 = vpack.c.b16 %v719, %v717
    %v758 = vpack.c.b16 %v722, %v720
    %v759 = vpack.c.b16 %v723, %v721
    %v760 = vpack.c.b16 %v726, %v724
    %v761 = vpack.c.b16 %v727, %v725
    %v762 = vpack.c.b16 %v730, %v728
    %v763 = vpack.c.b16 %v731, %v729
    %796 = vmatprep.subr.bf16.mxu0 %v733
    %797 = vmatpush1.bf16.msra.mxu0 %v732
    %798 = vmatprep.subr.bf16.mxu0 %v735
    %799 = vmatpush1.bf16.msra.mxu0 %v734
    %800 = vmatprep.subr.bf16.mxu0 %v737
    %801 = vmatpush1.bf16.msra.mxu0 %v736
    %802 = vmatprep.subr.bf16.mxu0 %v739
    %803 = vmatpush1.bf16.msra.mxu0 %v738
    %804 = vmatprep.subr.bf16.mxu0 %v741
    %805 = vmatpush1.bf16.msra.mxu0 %v740
    %806 = vmatprep.subr.bf16.mxu0 %v743
    %807 = vmatpush1.bf16.msra.mxu0 %v742
    %808 = vmatprep.subr.bf16.mxu0 %v745
    %809 = vmatpush1.bf16.msra.mxu0 %v744
    %810 = vmatprep.subr.bf16.mxu0 %v747
    %811 = vmatpush1.bf16.msra.mxu0 %v746
    %812 = vmatprep.subr.bf16.mxu0 %v749
    %813 = vmatpush1.bf16.msra.mxu0 %v748
    %814 = vmatprep.subr.bf16.mxu0 %v751
    %815 = vmatpush1.bf16.msra.mxu0 %v750
    %816 = vmatprep.subr.bf16.mxu0 %v753
    %817 = vmatpush1.bf16.msra.mxu0 %v752
    %818 = vmatprep.subr.bf16.mxu0 %v755
    %819 = vmatpush1.bf16.msra.mxu0 %v754
    %820 = vmatprep.subr.bf16.mxu0 %v757
    %821 = vmatpush1.bf16.msra.mxu0 %v756
    %822 = vmatprep.subr.bf16.mxu0 %v759
    %823 = vmatpush1.bf16.msra.mxu0 %v758
    %824 = vmatprep.subr.bf16.mxu0 %v761
    %825 = vmatpush1.bf16.msra.mxu0 %v760
    %826 = vmatprep.subr.bf16.mxu0 %v763
    %827 = vmatpush1.bf16.msra.mxu0 %v762
    %828 = vmatprep.mubr.bf16.mxu0 %v633
    %829 = vmatmul.mubr.bf16.gmra.mrb[0].mxu0 %v632
    %v830 = vpop.f32.mrb[0].mxu0
    %v831 = vadd.f32 %v624, %v830
    %v832 = vpop.f32.mrb[0].mxu0
    %v833 = vadd.f32 %v628, %v832
    %v834 = vpop.f32.mrb[0].mxu0
    %v835 = vpop.f32.mrb[0].mxu0
    %836 = vdwg.mxu0
    %v837 = vmul.f32 %v831, %v831
    %v838 = vmul.f32 %v833, %v833
    %v839 = vmul.f32 %v831, %v837
    %v840 = vmul.f32 %v833, %v838
    %v841 = vmul.f32 %v839, 0.044715
    %v842 = vmul.f32 %v840, 0.044715
    %v843 = vadd.f32 %v831, %v841
    %v844 = vadd.f32 %v833, %v842
    %v845 = vmul.f32 %v843, 0.7978846
    %v846 = vmul.f32 %v844, 0.7978846
    %v847 = vtanh.pop %v845
    %v848 = vtanh.pop %v846
    %v849 = vadd.f32 %v847, 1.0
    %v850 = vadd.f32 %v848, 1.0
    %v851 = vmul.f32 %v849, 0.5
    %v852 = vmul.f32 %v850, 0.5
    %v853 = vmul.f32 %v831, %v851
    %v854 = vmul.f32 %v833, %v852
    %v855 = vpack.c.bf16 %v853, %v853
    %v856 = vpack.c.bf16 %v854, %v854
    %v857 = vld [vmem:[%s6] sm:$0xff]
    %v858 = vld [vmem:[%s6 + $0x8] sm:$0xff]
    %v859 = vld [vmem:[%s6 + $0x10] sm:$0xff]
    %v860 = vld [vmem:[%s6 + $0x18] sm:$0xff]
    %v861 = vld [vmem:[%s6 + $0x20] sm:$0xff]
    %v862 = vld [vmem:[%s6 + $0x28] sm:$0xff]
    %v863 = vld [vmem:[%s6 + $0x30] sm:$0xff]
    %v864 = vld [vmem:[%s6 + $0x38] sm:$0xff]
    %v865 = vld [vmem:[%s6 + $0x40] sm:$0xff]
    %v866 = vld [vmem:[%s6 + $0x48] sm:$0xff]
    %v867 = vld [vmem:[%s6 + $0x50] sm:$0xff]
    %v868 = vld [vmem:[%s6 + $0x58] sm:$0xff]
    %v869 = vld [vmem:[%s6 + $0x60] sm:$0xff]
    %v870 = vld [vmem:[%s6 + $0x68] sm:$0xff]
    %v871 = vld [vmem:[%s6 + $0x70] sm:$0xff]
    %v872 = vld [vmem:[%s6 + $0x78] sm:$0xff]
    %v873 = vld [vmem:[%s6 + $0x80] sm:$0xff]
    %v874 = vld [vmem:[%s6 + $0x88] sm:$0xff]
    %v875 = vld [vmem:[%s6 + $0x90] sm:$0xff]
    %v876 = vld [vmem:[%s6 + $0x98] sm:$0xff]
    %v877 = vld [vmem:[%s6 + $0xa0] sm:$0xff]
    %v878 = vld [vmem:[%s6 + $0xa8] sm:$0xff]
    %v879 = vld [vmem:[%s6 + $0xb0] sm:$0xff]
    %v880 = vld [vmem:[%s6 + $0xb8] sm:$0xff]
    %v881 = vld [vmem:[%s6 + $0xc0] sm:$0xff]
    %v882 = vld [vmem:[%s6 + $0xc8] sm:$0xff]
    %v883 = vld [vmem:[%s6 + $0xd0] sm:$0xff]
    %v884 = vld [vmem:[%s6 + $0xd8] sm:$0xff]
    %v885 = vld [vmem:[%s6 + $0xe0] sm:$0xff]
    %v886 = vld [vmem:[%s6 + $0xe8] sm:$0xff]
    %v887 = vld [vmem:[%s6 + $0xf0] sm:$0xff]
    %v888 = vld [vmem:[%s6 + $0xf8] sm:$0xff]
    %v889 = vlaneseq
    %v890 = vshrl.u32 %v889, 7
    %v891 = vsub.s32 1, %v890
    %v892 = vrot.slane %v586, %v891
    %v893 = vlaneseq
    %v894 = vshrl.u32 %v893, 7
    %v895 = vsub.s32 1, %v894
    %v896 = vrot.slane %v587, %v895
    %v929 = vunpack.c.l.b16 %v857
    %v930 = vunpack.c.h.b16 %v857
    %v931 = vunpack.c.l.b16 %v858
    %v932 = vunpack.c.h.b16 %v858
    %v933 = vunpack.c.l.b16 %v859
    %v934 = vunpack.c.h.b16 %v859
    %v935 = vunpack.c.l.b16 %v860
    %v936 = vunpack.c.h.b16 %v860
    %v937 = vunpack.c.l.b16 %v861
    %v938 = vunpack.c.h.b16 %v861
    %v939 = vunpack.c.l.b16 %v862
    %v940 = vunpack.c.h.b16 %v862
    %v941 = vunpack.c.l.b16 %v863
    %v942 = vunpack.c.h.b16 %v863
    %v943 = vunpack.c.l.b16 %v864
    %v944 = vunpack.c.h.b16 %v864
    %v945 = vunpack.c.l.b16 %v865
    %v946 = vunpack.c.h.b16 %v865
    %v947 = vunpack.c.l.b16 %v866
    %v948 = vunpack.c.h.b16 %v866
    %v949 = vunpack.c.l.b16 %v867
    %v950 = vunpack.c.h.b16 %v867
    %v951 = vunpack.c.l.b16 %v868
    %v952 = vunpack.c.h.b16 %v868
    %v953 = vunpack.c.l.b16 %v869
    %v954 = vunpack.c.h.b16 %v869
    %v955 = vunpack.c.l.b16 %v870
    %v956 = vunpack.c.h.b16 %v870
    %v957 = vunpack.c.l.b16 %v871
    %v958 = vunpack.c.h.b16 %v871
    %v959 = vunpack.c.l.b16 %v872
    %v960 = vunpack.c.h.b16 %v872
    %v961 = vunpack.c.l.b16 %v873
    %v962 = vunpack.c.h.b16 %v873
    %v963 = vunpack.c.l.b16 %v874
    %v964 = vunpack.c.h.b16 %v874
    %v965 = vunpack.c.l.b16 %v875
    %v966 = vunpack.c.h.b16 %v875
    %v967 = vunpack.c.l.b16 %v876
    %v968 = vunpack.c.h.b16 %v876
    %v969 = vunpack.c.l.b16 %v877
    %v970 = vunpack.c.h.b16 %v877
    %v971 = vunpack.c.l.b16 %v878
    %v972 = vunpack.c.h.b16 %v878
    %v973 = vunpack.c.l.b16 %v879
    %v974 = vunpack.c.h.b16 %v879
    %v975 = vunpack.c.l.b16 %v880
    %v976 = vunpack.c.h.b16 %v880
    %v977 = vunpack.c.l.b16 %v881
    %v978 = vunpack.c.h.b16 %v881
    %v979 = vunpack.c.l.b16 %v882
    %v980 = vunpack.c.h.b16 %v882
    %v981 = vunpack.c.l.b16 %v883
    %v982 = vunpack.c.h.b16 %v883
    %v983 = vunpack.c.l.b16 %v884
    %v984 = vunpack.c.h.b16 %v884
    %v985 = vunpack.c.l.b16 %v885
    %v986 = vunpack.c.h.b16 %v885
    %v987 = vunpack.c.l.b16 %v886
    %v988 = vunpack.c.h.b16 %v886
    %v989 = vunpack.c.l.b16 %v887
    %v990 = vunpack.c.h.b16 %v887
    %v991 = vunpack.c.l.b16 %v888
    %v992 = vunpack.c.h.b16 %v888
    %v993 = vpack.c.b16 %v931, %v929
    %v994 = vpack.c.b16 %v932, %v930
    %v995 = vpack.c.b16 %v935, %v933
    %v996 = vpack.c.b16 %v936, %v934
    %v997 = vpack.c.b16 %v939, %v937
    %v998 = vpack.c.b16 %v940, %v938
    %v999 = vpack.c.b16 %v943, %v941
    %v1000 = vpack.c.b16 %v944, %v942
    %v1001 = vpack.c.b16 %v947, %v945
    %v1002 = vpack.c.b16 %v948, %v946
    %v1003 = vpack.c.b16 %v951, %v949
    %v1004 = vpack.c.b16 %v952, %v950
    %v1005 = vpack.c.b16 %v955, %v953
    %v1006 = vpack.c.b16 %v956, %v954
    %v1007 = vpack.c.b16 %v959, %v957
    %v1008 = vpack.c.b16 %v960, %v958
    %v1009 = vpack.c.b16 %v963, %v961
    %v1010 = vpack.c.b16 %v964, %v962
    %v1011 = vpack.c.b16 %v967, %v965
    %v1012 = vpack.c.b16 %v968, %v966
    %v1013 = vpack.c.b16 %v971, %v969
    %v1014 = vpack.c.b16 %v972, %v970
    %v1015 = vpack.c.b16 %v975, %v973
    %v1016 = vpack.c.b16 %v976, %v974
    %v1017 = vpack.c.b16 %v979, %v977
    %v1018 = vpack.c.b16 %v980, %v978
    %v1019 = vpack.c.b16 %v983, %v981
    %v1020 = vpack.c.b16 %v984, %v982
    %v1021 = vpack.c.b16 %v987, %v985
    %v1022 = vpack.c.b16 %v988, %v986
    %v1023 = vpack.c.b16 %v991, %v989
    %v1024 = vpack.c.b16 %v992, %v990
    %1057 = vmatprep.subr.bf16.mxu0 %v994
    %1058 = vmatpush1.bf16.msra.mxu0 %v993
    %1059 = vmatprep.subr.bf16.mxu0 %v996
    %1060 = vmatpush1.bf16.msra.mxu0 %v995
    %1061 = vmatprep.subr.bf16.mxu0 %v998
    %1062 = vmatpush1.bf16.msra.mxu0 %v997
    %1063 = vmatprep.subr.bf16.mxu0 %v1000
    %1064 = vmatpush1.bf16.msra.mxu0 %v999
    %1065 = vmatprep.subr.bf16.mxu0 %v1002
    %1066 = vmatpush1.bf16.msra.mxu0 %v1001
    %1067 = vmatprep.subr.bf16.mxu0 %v1004
    %1068 = vmatpush1.bf16.msra.mxu0 %v1003
    %1069 = vmatprep.subr.bf16.mxu0 %v1006
    %1070 = vmatpush1.bf16.msra.mxu0 %v1005
    %1071 = vmatprep.subr.bf16.mxu0 %v1008
    %1072 = vmatpush1.bf16.msra.mxu0 %v1007
    %1073 = vmatprep.subr.bf16.mxu0 %v1010
    %1074 = vmatpush1.bf16.msra.mxu0 %v1009
    %1075 = vmatprep.subr.bf16.mxu0 %v1012
    %1076 = vmatpush1.bf16.msra.mxu0 %v1011
    %1077 = vmatprep.subr.bf16.mxu0 %v1014
    %1078 = vmatpush1.bf16.msra.mxu0 %v1013
    %1079 = vmatprep.subr.bf16.mxu0 %v1016
    %1080 = vmatpush1.bf16.msra.mxu0 %v1015
    %1081 = vmatprep.subr.bf16.mxu0 %v1018
    %1082 = vmatpush1.bf16.msra.mxu0 %v1017
    %1083 = vmatprep.subr.bf16.mxu0 %v1020
    %1084 = vmatpush1.bf16.msra.mxu0 %v1019
    %1085 = vmatprep.subr.bf16.mxu0 %v1022
    %1086 = vmatpush1.bf16.msra.mxu0 %v1021
    %1087 = vmatprep.subr.bf16.mxu0 %v1024
    %1088 = vmatpush1.bf16.msra.mxu0 %v1023
    %1089 = vmatprep.mubr.bf16.mxu0 %v856
    %1090 = vmatmul.mubr.bf16.gmra.mrb[0].mxu0 %v855
    %v1091 = vpop.f32.mrb[0].mxu0
    %v1092 = vadd.f32 %v892, %v1091
    %v1093 = vpop.f32.mrb[0].mxu0
    %v1094 = vadd.f32 %v896, %v1093
    %v1095 = vpop.f32.mrb[0].mxu0
    %v1096 = vpop.f32.mrb[0].mxu0
    %1097 = vdwg.mxu0
    %v1098 = vadd.f32 %v1092, %v831
    %v1099 = vadd.f32 %v1094, %v833
    %v1100 = vadd.f32 %v1098, %v1099
    %1101 = vadd.xlane.f32.xlu0 %v1100
    %v1102 = vpop.xlane.xlu0 %1101
    %v1103 = vmul.f32 %v1102, %v552
    %v1104 = vsub.f32 %v1098, %v1103
    %v1105 = vsub.f32 %v1099, %v1103
    %v1106 = vmul.f32 %v1104, %v1104
    %v1107 = vmul.f32 %v1105, %v1105
    %v1108 = vadd.f32 %v1106, %v1107
    %1109 = vadd.xlane.f32.xlu0 %v1108
    %v1110 = vpop.xlane.xlu0 %1109
    %v1111 = vmul.f32 %v1110, %v552
    %v1112 = vadd.f32 %v1111, 1e-05
    %v1113 = vrsqrt.pop %v1112
    %v1114 = vmul.f32 %v1104, %v1113
    %v1115 = vmul.f32 %v1105, %v1113
    %v1116 = vlaneseq
    %v1117 = vshrl.u32 %v1116, 7
    %v1118 = vsub.s32 2, %v1117
    %v1119 = vrot.slane %v586, %v1118
    %v1120 = vlaneseq
    %v1121 = vshrl.u32 %v1120, 7
    %v1122 = vsub.s32 2, %v1121
    %v1123 = vrot.slane %v587, %v1122
    %v1124 = vmul.f32 %v1114, %v1119
    %v1125 = vmul.f32 %v1115, %v1123
    %v1126 = vlaneseq
    %v1127 = vshrl.u32 %v1126, 7
    %v1128 = vsub.s32 3, %v1127
    %v1129 = vrot.slane %v586, %v1128
    %v1130 = vlaneseq
    %v1131 = vshrl.u32 %v1130, 7
    %v1132 = vsub.s32 3, %v1131
    %v1133 = vrot.slane %v587, %v1132
    %v1134 = vadd.f32 %v1124, %v1129
    %v1135 = vadd.f32 %v1125, %v1133
    %s1136 = smul.u32 0, 8
    %v1137 = vpack.c.bf16 %v584, %v584
    %v1138 = vpack.c.bf16 %v585, %v585
    %v1141 = vunpack.c.l.b16 %v1137
    %v1142 = vunpack.c.l.b16 %v1138
    %v1143 = vpack.c.b16 %v1142, %v1141
    %s1145 = sshra.s32 %s1136, 3
    %s1146 = sand.u32 %s1136, 7
    %s1147 = smul.u32 %s1145, 4
    %s1148 = smul.addr %s1147, 4
    %s1149 = scalar_lea.vmem [#allocation2], %s1148
    %1150 = vst [vmem:[%s1149] sm:$0xff] %v1143
    %v1151 = vpack.c.bf16 %v1134, %v1134
    %v1152 = vpack.c.bf16 %v1135, %v1135
    %v1155 = vunpack.c.l.b16 %v1151
    %v1156 = vunpack.c.l.b16 %v1152
    %v1157 = vpack.c.b16 %v1156, %v1155
    %1159 = vst [vmem:[%s1149 + $0x8] sm:$0xff] %v1157
    %p1160 = scmp.eq.s32.totalorder 0, 0
    // Predicated region
    $region38: #{ccip_forward.1} parent=1 // pred_check
      %p1161 = pneg %p1160
    $region39: #{ccip_forward.1} parent=1 // pred_check_branch
      %1163 = sbr.rel (%p1161) target = $region41
    $region40: #{ccip_forward.1} parent=1 // pred_region
      %v1164 = vld [vmem:[#allocation2] sm:$0xff]
      %v1165 = vld [vmem:[#allocation2 + $0x8] sm:$0xff]
      %s1166 = sld [smem:[#allocation3]]
      %v1167 = vstv %s1166
      %v1168 = vmul.f32 %v1167, 1.442695
      %v1169 = vpow.pop %v1168
      %s1170 = vtos %v1169
      %v1173 = vunpack.c.l.b16 %v1164
      %v1174 = vunpack.c.h.b16 %v1164
      %v1175 = vunpack.c.l.b16 %v1165
      %v1176 = vunpack.c.h.b16 %v1165
      %v1177 = vpack.c.b16 %v1173, %v1173
      %v1178 = vpack.c.b16 %v1174, %v1174
      %v1179 = vpack.c.b16 %v1175, %v1175
      %v1180 = vpack.c.b16 %v1176, %v1176
      %1185 = vmatprep.subr.bf16.mxu0 %v1178
      %1186 = vmatpush1.bf16.xpose.msra.mxu0 %v1177
      %1187 = vmatprep.subr.bf16.mxu0 0
      %1188 = vmatpush1.bf16.xpose.msra.mxu0 0
      %1189 = vmatprep.subr.bf16.mxu0 0
      %1190 = vmatpush1.bf16.xpose.msra.mxu0 0
      %1191 = vmatprep.subr.bf16.mxu0 0
      %1192 = vmatpush1.bf16.xpose.msra.mxu0 0
      %1193 = vmatprep.subr.bf16.mxu0 0
      %1194 = vmatpush1.bf16.xpose.msra.mxu0 0
      %1195 = vmatprep.subr.bf16.mxu0 0
      %1196 = vmatpush1.bf16.xpose.msra.mxu0 0
      %1197 = vmatprep.subr.bf16.mxu0 0
      %1198 = vmatpush1.bf16.xpose.msra.mxu0 0
      %1199 = vmatprep.subr.bf16.mxu0 0
      %1200 = vmatpush1.bf16.xpose.msra.mxu0 0
      %1201 = vmatprep.subr.bf16.mxu0 0
      %1202 = vmatpush1.bf16.xpose.msra.mxu0 0
      %1203 = vmatprep.subr.bf16.mxu0 0
      %1204 = vmatpush1.bf16.xpose.msra.mxu0 0
      %1205 = vmatprep.subr.bf16.mxu0 0
      %1206 = vmatpush1.bf16.xpose.msra.mxu0 0
      %1207 = vmatprep.subr.bf16.mxu0 0
      %1208 = vmatpush1.bf16.xpose.msra.mxu0 0
      %1209 = vmatprep.subr.bf16.mxu0 0
      %1210 = vmatpush1.bf16.xpose.msra.mxu0 0
      %1211 = vmatprep.subr.bf16.mxu0 0
      %1212 = vmatpush1.bf16.xpose.msra.mxu0 0
      %1213 = vmatprep.subr.bf16.mxu0 0
      %1214 = vmatpush1.bf16.xpose.msra.mxu0 0
      %1215 = vmatprep.subr.bf16.mxu0 0
      %1216 = vmatpush1.bf16.xpose.msra.mxu0 0
      %1217 = vmatprep.mubr.bf16.mxu0 %v1178
      %1218 = vmatmul.mubr.bf16.gmra.mrb[0].mxu0 %v1177
      %v1219 = vpop.f32.mrb[0].mxu0
      %v1220 = vadd.f32 0.0, %v1219
      %v1221 = vpop.f32.mrb[0].mxu0
      %v1222 = vpop.f32.mrb[0].mxu0
      %v1223 = vpop.f32.mrb[0].mxu0
      %1224 = vdwg.mxu0
      %1225 = vmatprep.subr.bf16.mxu0 %v1180
      %1226 = vmatpush1.bf16.xpose.msra.mxu0 %v1179
      %1227 = vmatprep.subr.bf16.mxu0 0
      %1228 = vmatpush1.bf16.xpose.msra.mxu0 0
      %1229 = vmatprep.subr.bf16.mxu0 0
      %1230 = vmatpush1.bf16.xpose.msra.mxu0 0
      %1231 = vmatprep.subr.bf16.mxu0 0
      %1232 = vmatpush1.bf16.xpose.msra.mxu0 0
      %1233 = vmatprep.subr.bf16.mxu0 0
      %1234 = vmatpush1.bf16.xpose.msra.mxu0 0
      %1235 = vmatprep.subr.bf16.mxu0 0
      %1236 = vmatpush1.bf16.xpose.msra.mxu0 0
      %1237 = vmatprep.subr.bf16.mxu0 0
      %1238 = vmatpush1.bf16.xpose.msra.mxu0 0
      %1239 = vmatprep.subr.bf16.mxu0 0
      %1240 = vmatpush1.bf16.xpose.msra.mxu0 0
      %1241 = vmatprep.subr.bf16.mxu0 0
      %1242 = vmatpush1.bf16.xpose.msra.mxu0 0
      %1243 = vmatprep.subr.bf16.mxu0 0
      %1244 = vmatpush1.bf16.xpose.msra.mxu0 0
      %1245 = vmatprep.subr.bf16.mxu0 0
      %1246 = vmatpush1.bf16.xpose.msra.mxu0 0
      %1247 = vmatprep.subr.bf16.mxu0 0
      %1248 = vmatpush1.bf16.xpose.msra.mxu0 0
      %1249 = vmatprep.subr.bf16.mxu0 0
      %1250 = vmatpush1.bf16.xpose.msra.mxu0 0
      %1251 = vmatprep.subr.bf16.mxu0 0
      %1252 = vmatpush1.bf16.xpose.msra.mxu0 0
      %1253 = vmatprep.subr.bf16.mxu0 0
      %1254 = vmatpush1.bf16.xpose.msra.mxu0 0
      %1255 = vmatprep.subr.bf16.mxu0 0
      %1256 = vmatpush1.bf16.xpose.msra.mxu0 0
      %1257 = vmatprep.mubr.bf16.mxu0 %v1180
      %1258 = vmatmul.mubr.bf16.gmra.mrb[0].mxu0 %v1179
      %v1259 = vpop.f32.mrb[0].mxu0
      %v1260 = vadd.f32 %v1220, %v1259
      %v1261 = vpop.f32.mrb[0].mxu0
      %v1262 = vpop.f32.mrb[0].mxu0
      %v1263 = vpop.f32.mrb[0].mxu0
      %1264 = vdwg.mxu0
      %1265 = vmatprep.subr.bf16.mxu0 %v1178
      %1266 = vmatpush1.bf16.xpose.msra.mxu0 %v1177
      %1267 = vmatprep.subr.bf16.mxu0 0
      %1268 = vmatpush1.bf16.xpose.msra.mxu0 0
      %1269 = vmatprep.subr.bf16.mxu0 0
      %1270 = vmatpush1.bf16.xpose.msra.mxu0 0
      %1271 = vmatprep.subr.bf16.mxu0 0
      %1272 = vmatpush1.bf16.xpose.msra.mxu0 0
      %1273 = vmatprep.subr.bf16.mxu0 0
      %1274 = vmatpush1.bf16.xpose.msra.mxu0 0
      %1275 = vmatprep.subr.bf16.mxu0 0
      %1276 = vmatpush1.bf16.xpose.msra.mxu0 0
      %1277 = vmatprep.subr.bf16.mxu0 0
      %1278 = vmatpush1.bf16.xpose.msra.mxu0 0
      %1279 = vmatprep.subr.bf16.mxu0 0
      %1280 = vmatpush1.bf16.xpose.msra.mxu0 0
      %1281 = vmatprep.subr.bf16.mxu0 0
      %1282 = vmatpush1.bf16.xpose.msra.mxu0 0
      %1283 = vmatprep.subr.bf16.mxu0 0
      %1284 = vmatpush1.bf16.xpose.msra.mxu0 0
      %1285 = vmatprep.subr.bf16.mxu0 0
      %1286 = vmatpush1.bf16.xpose.msra.mxu0 0
      %1287 = vmatprep.subr.bf16.mxu0 0
      %1288 = vmatpush1.bf16.xpose.msra.mxu0 0
      %1289 = vmatprep.subr.bf16.mxu0 0
      %1290 = vmatpush1.bf16.xpose.msra.mxu0 0
      %1291 = vmatprep.subr.bf16.mxu0 0
      %1292 = vmatpush1.bf16.xpose.msra.mxu0 0
      %1293 = vmatprep.subr.bf16.mxu0 0
      %1294 = vmatpush1.bf16.xpose.msra.mxu0 0
      %1295 = vmatprep.subr.bf16.mxu0 0
      %1296 = vmatpush1.bf16.xpose.msra.mxu0 0
      %1297 = vmatprep.mubr.bf16.mxu0 %v1180
      %1298 = vmatmul.mubr.bf16.gmra.mrb[0].mxu0 %v1179
      %v1299 = vpop.f32.mrb[0].mxu0
      %v1300 = vadd.f32 0.0, %v1299
      %v1301 = vpop.f32.mrb[0].mxu0
      %v1302 = vpop.f32.mrb[0].mxu0
      %v1303 = vpop.f32.mrb[0].mxu0
      %1304 = vdwg.mxu0
      %v1305 = vstv %s1170
      %v1306 = vmul.f32 %v1305, %v1300
      %s1307 = smul.f32 %s1170, 0.5
      %v1308 = vstv %s1307
      %v1309 = vmul.f32 %v1308, %v1260
      %vm1310 = vcmask 64512
      %v1311 = vsel %vm1310, %v1309, -inf
      %1312 = vmax.xlane.f32.xlu0 %v1311
      %v1313 = vpop.xlane.xlu0 %1312
      %v1314 = vsub.f32 %v1309, %v1313
      %v1315 = vmul.f32 %v1314, 1.442695
      %v1316 = vpow.pop %v1315
      %v1317 = vsel %vm1310, %v1316, 0.0
      %1318 = vadd.xlane.f32.xlu0 %v1317
      %v1319 = vpop.xlane.xlu0 %1318
      %v1320 = vrcp.pop %v1319
      %v1321 = vmul.f32 %v1316, %v1306
      %v1322 = vsel %vm1310, %v1321, 0.0
      %1323 = vadd.xlane.f32.xlu0 %v1322
      %v1324 = vpop.xlane.xlu0 %1323
      %v1325 = vmul.f32 %v1324, %v1320
      %vm1326 = vcmask 7168
      %v1327 = vsel %vm1326, %v1325, 0.0
      %1328 = vadd.xlane.f32.xlu0 %v1327
      %v1329 = vpop.xlane.xlu0 %1328
      %v1330 = vrot.slane %v1329, 4
      %v1331 = vadd.f32 %v1329, %v1330
      %v1332 = vrot.slane %v1331, 2
      %v1333 = vadd.f32 %v1331, %v1332
      %v1334 = vrot.slane %v1333, 1
      %v1335 = vadd.f32 %v1333, %v1334
      %s1336 = vtos %v1335
      %v1337 = vmul.f32 %v1316, %v1320
      %v1338 = vsel %vm1310, %v1337, 0.0
      %v1339 = vrot.slane %v1338, 4
      %v1340 = vadd.f32 %v1338, %v1339
      %v1341 = vrot.slane %v1340, 2
      %v1342 = vadd.f32 %v1340, %v1341
      %v1343 = vrot.slane %v1342, 1
      %v1344 = vadd.f32 %v1342, %v1343
      %v1345 = vsel %vm1310, %v1306, -inf
      %1346 = vmax.xlane.f32.xlu0 %v1345
      %v1347 = vpop.xlane.xlu0 %1346
      %v1348 = vsub.f32 %v1306, %v1347
      %v1349 = vmul.f32 %v1348, 1.442695
      %v1350 = vpow.pop %v1349
      %v1351 = vsel %vm1310, %v1350, 0.0
      %1352 = vadd.xlane.f32.xlu0 %v1351
      %v1353 = vpop.xlane.xlu0 %1352
      %v1354 = vlog2.pop %v1353
      %v1355 = vmul.f32 %v1354, 0.6931472
      %v1356 = vadd.f32 %v1347, %v1355
      %v1357 = vrot.slane %v1345, 4
      %v1358 = vmax.f32 %v1345, %v1357
      %v1359 = vrot.slane %v1358, 2
      %v1360 = vmax.f32 %v1358, %v1359
      %v1361 = vrot.slane %v1360, 1
      %v1362 = vmax.f32 %v1360, %v1361
      %v1363 = vsub.f32 %v1306, %v1362
      %v1364 = vmul.f32 %v1363, 1.442695
      %v1365 = vpow.pop %v1364
      %v1366 = vsel %vm1310, %v1365, 0.0
      %v1367 = vrot.slane %v1366, 4
      %v1368 = vadd.f32 %v1366, %v1367
      %v1369 = vrot.slane %v1368, 2
      %v1370 = vadd.f32 %v1368, %v1369
      %v1371 = vrot.slane %v1370, 1
      %v1372 = vadd.f32 %v1370, %v1371
      %v1373 = vlog2.pop %v1372
      %v1374 = vmul.f32 %v1373, 0.6931472
      %v1375 = vadd.f32 %v1362, %v1374
      %v1376 = vsel %vm1326, %v1356, 0.0
      %1377 = vadd.xlane.f32.xlu0 %v1376
      %v1378 = vpop.xlane.xlu0 %1377
      %v1379 = vrot.slane %v1378, 4
      %v1380 = vadd.f32 %v1378, %v1379
      %v1381 = vrot.slane %v1380, 2
      %v1382 = vadd.f32 %v1380, %v1381
      %v1383 = vrot.slane %v1382, 1
      %v1384 = vadd.f32 %v1382, %v1383
      %s1385 = vtos %v1384
      %s1386 = ssub.f32 %s1385, %s1336
      %v1387 = vmul.f32 %v1375, %v1344
      %vm1388 = vcmask 57344
      %v1389 = vsel %vm1388, %v1387, 0.0
      %1390 = vadd.xlane.f32.xlu0 %v1389
      %v1391 = vpop.xlane.xlu0 %1390
      %v1392 = vrot.slane %v1391, 4
      %v1393 = vadd.f32 %v1391, %v1392
      %v1394 = vrot.slane %v1393, 2
      %v1395 = vadd.f32 %v1393, %v1394
      %v1396 = vrot.slane %v1395, 1
      %v1397 = vadd.f32 %v1395, %v1396
      %s1398 = vtos %v1397
      %s1399 = ssub.f32 %s1398, %s1336
      %s1400 = sadd.f32 %s1386, %s1399
      %s1401 = smul.f32 %s1400, 0.0625
      %s1402 = scalar_lea.smem [#allocation4], 0
      %1403 = sst [smem:[%s1402]] %s1401
    $region41: #{ccip_forward.1} parent=1 // pred_fallthru
      _
    // Predicated region
    $region42: #{ccip_forward.1} parent=1 // pred_check
      _
    $region43: #{ccip_forward.1} parent=1 // pred_check_branch
      %1405 = sbr.rel (0) target = $region45
    $region44: #{ccip_forward.1} parent=1 // pred_region
      %s1407 = ssub.s32 16, 16
      %1408 = vsyncadd [#allocation5], %s1407
      %1411 = dma.smem_to_hbm [#allocation4], 16, %s9, [#allocation5]
    $region45: #{ccip_forward.1} parent=1 // pred_fallthru
      _
    // Predicated region
    $region46: #{ccip_forward.1} parent=1 // pred_check
      _
    $region47: #{ccip_forward.1} parent=1 // pred_check_branch
      %1413 = sbr.rel (0) target = $region49
    $region48: #{ccip_forward.1} parent=1 // pred_region
      %1414 = dma.done [#allocation5], 16
    $region49: #{ccip_forward.1} parent=1 // pred_fallthru
      _
    %1415 = sfence
    %1416 = vsyncpa [#allocation5], 1

</llo_original>
